<compile_context>
chip_gen: v6e
topology: v6e:2x2x1
jax: 0.10.0
libtpu: 0.0.40
codegen_flags: <defaults>
</compile_context>

<pallas_src>
import functools

import jax
import jax.numpy as jnp
from jax.experimental import pallas as pl
from jax.experimental.pallas import tpu as pltpu


# ------------------------------ Pallas kernel --------------------------------
def _fused_ban_kernel(pzT_ref, px_ref, wzT_ref, wsc_ref, wsl_ref, wadj_ref,
                      badj_ref, out_ref, *, C, cls_out, loc_out, Hz, Wz,
                      Hxo, Wxo):
    """Fused template-conv + search-conv + xcorr + loc_adjust for one batch.

    pzT: (1, Mz, Kz+1)  bf16   template im2col patches (ones column appended)
    px : (1, Kx+1, Mx)  bf16   search   im2col patches (ones row appended)
    wzT: (Kz+1, Nz)     bf16   fused [template_cls | template_loc] weights^T
    wsc/wsl: (C, Kx+1)  bf16   search cls/loc conv weights (+bias column)
    wadj: (4,4) f32, badj: (4,1) f32  -- loc_adjust 1x1 conv
    out: (1, cls_out+loc_out, L0)  f32  flattened response maps
    """
    Mz = Hz * Wz
    Ho, Wo = Hxo - Hz + 1, Wxo - Wz + 1
    L0 = (Ho - 1) * Wxo + Wo
    T = cls_out + loc_out

    # 1) template convs (cls+loc fused along out-channels), bias folded via the
    #    ones column.  zT[mz, o*C + c] = template kernel value for output
    #    channel (o, c) at template-spatial position mz.  Nz on lanes.
    zT = jnp.dot(pzT_ref[0], wzT_ref[...],
                 preferred_element_type=jnp.float32)            # (Mz, Nz) f32

    # 2) regroup into per-xcorr-output-channel filter blocks, rows ordered
    #    (t, mz).  NOTE: relies on the template conv out-channel index being
    #    o*C + c (out-channel-major), exactly as xcorr_fast's .view() assumes.
    blocks = [zT[:, t * C:(t + 1) * C] for t in range(T)]
    k_cls = jnp.concatenate(blocks[:cls_out], axis=0).astype(jnp.bfloat16)
    k_loc = jnp.concatenate(blocks[cls_out:], axis=0).astype(jnp.bfloat16)

    # 3) fold the search 3x3 convs into the correlation filters:
    #    (K @ W_search) @ patches == K @ (W_search @ patches)
    f_cls = jnp.dot(k_cls, wsc_ref[...], preferred_element_type=jnp.float32)
    f_loc = jnp.dot(k_loc, wsl_ref[...], preferred_element_type=jnp.float32)
    f_all = jnp.concatenate([f_cls, f_loc], axis=0).astype(jnp.bfloat16)

    # 4) one lane-dense matmul against the raw-search patches (bias via ones row)
    g = jnp.dot(f_all, px_ref[0],
                preferred_element_type=jnp.float32)              # (T*Mz, Mx) f32

    # 5) the actual cross-correlation: shift-and-add over the Mz template
    #    positions, accumulated in the search-feature flat geometry.
    rows = []
    for t in range(T):
        acc = jnp.zeros((1, L0), jnp.float32)
        for hz in range(Hz):
            for wz in range(Wz):
                r = t * Mz + hz * Wz + wz
                s = hz * Wxo + wz
                acc = acc + g[r:r + 1, s:s + L0]
        rows.append(acc)
    cls_rows = jnp.concatenate(rows[:cls_out], axis=0)           # (cls_out, L0)
    loc_raw = jnp.concatenate(rows[cls_out:], axis=0)            # (loc_out, L0)

    # 6) loc_adjust 1x1 conv in f32 (exact fold, no bf16 re-rounding).
    loc_rows = (jnp.dot(wadj_ref[...], loc_raw,
                        preferred_element_type=jnp.float32) + badj_ref[...])

    out_ref[0] = jnp.concatenate([cls_rows, loc_rows], axis=0)


def pallas_fused_ban(pzT, px, wzT, wsc, wsl, wadj, badj, *, C, cls_out,
                     loc_out, Hz, Wz, Hxo, Wxo):
    B, Mz, Kz1 = pzT.shape
    _, Kx1, Mx = px.shape
    Nz = wzT.shape[1]
    T = cls_out + loc_out
    Ho, Wo = Hxo - Hz + 1, Wxo - Wz + 1
    L0 = (Ho - 1) * Wxo + Wo

    kernel = functools.partial(_fused_ban_kernel, C=C, cls_out=cls_out,
                               loc_out=loc_out, Hz=Hz, Wz=Wz, Hxo=Hxo, Wxo=Wxo)
    grid_spec = pltpu.PrefetchScalarGridSpec(
        num_scalar_prefetch=0,
        grid=(B,),
        in_specs=[
            pl.BlockSpec((1, Mz, Kz1), lambda b: (b, 0, 0)),     # pzT
            pl.BlockSpec((1, Kx1, Mx), lambda b: (b, 0, 0)),     # px
            pl.BlockSpec((Kz1, Nz), lambda b: (0, 0)),           # wzT (invariant)
            pl.BlockSpec((C, Kx1), lambda b: (0, 0)),            # wsc (invariant)
            pl.BlockSpec((C, Kx1), lambda b: (0, 0)),            # wsl (invariant)
            pl.BlockSpec((loc_out, loc_out), lambda b: (0, 0)),  # wadj
            pl.BlockSpec((loc_out, 1), lambda b: (0, 0)),        # badj
        ],
        out_specs=pl.BlockSpec((1, T, L0), lambda b: (b, 0, 0)),
    )
    return pl.pallas_call(
        kernel,
        out_shape=jax.ShapeDtypeStruct((B, T, L0), jnp.float32),
        grid_spec=grid_spec,
        compiler_params=pltpu.CompilerParams(
            dimension_semantics=("parallel",),
            vmem_limit_bytes=32 * 1024 * 1024,
        ),
    )(pzT, px, wzT, wsc, wsl, wadj, badj)


# ------------------------------- JAX glue ------------------------------------
def _im2col(x, kh, kw):
    """x: (B, C, H, W) -> (B, C*kh*kw, Ho*Wo), K ordered (c, dh, dw)."""
    B, C, H, W = x.shape
    Ho, Wo = H - kh + 1, W - kw + 1
    cols = []
    for dh in range(kh):
        for dw in range(kw):
            cols.append(x[:, :, dh:dh + Ho, dw:dw + Wo])
    p = jnp.stack(cols, axis=2)                     # (B, C, kh*kw, Ho, Wo)
    return p.reshape(B, C * kh * kw, Ho * Wo), Ho, Wo


# ------------------------- UPChannelBAN parameters ---------------------------
def init_upchannel_ban_params(key, feature_in=32, cls_out_channels=2):
    ks = jax.random.split(key, 10)

    def conv_params(kw_, kb_, cout, cin, k):
        scale = 1.0 / float(cin * k * k) ** 0.5
        w = jax.random.uniform(kw_, (cout, cin, k, k), jnp.float32, -scale, scale)
        b = jax.random.uniform(kb_, (cout,), jnp.float32, -scale, scale)
        return w, b

    loc_output = 4
    return {
        "template_cls": conv_params(ks[0], ks[1], feature_in * cls_out_channels, feature_in, 3),
        "template_loc": conv_params(ks[2], ks[3], feature_in * loc_output, feature_in, 3),
        "search_cls":   conv_params(ks[4], ks[5], feature_in, feature_in, 3),
        "search_loc":   conv_params(ks[6], ks[7], feature_in, feature_in, 3),
        "loc_adjust":   conv_params(ks[8], ks[9], loc_output, loc_output, 1),
    }


def prepare_ban_params(params):
    """One-time weight fusion / bias augmentation / transpose / bf16 cast."""
    w_tc, b_tc = params["template_cls"]
    w_tl, b_tl = params["template_loc"]
    w_sc, b_sc = params["search_cls"]
    w_sl, b_sl = params["search_loc"]
    w_adj, b_adj = params["loc_adjust"]

    C = w_sc.shape[0]
    cls_out = w_tc.shape[0] // C
    loc_out = w_tl.shape[0] // C                    # == 4
    Kz = C * w_tc.shape[2] * w_tc.shape[3]          # C*9

    # fused template weights, bias folded as an extra K column, transposed.
    wz = jnp.concatenate([w_tc, w_tl], axis=0).reshape(-1, Kz)
    bz = jnp.concatenate([b_tc, b_tl], axis=0)
    wzT = jnp.concatenate([wz, bz[:, None]], axis=1).T.astype(jnp.bfloat16)

    def aug(w, b):                                  # (C, K+1) bf16
        return jnp.concatenate([w.reshape(C, -1), b[:, None]],
                               axis=1).astype(jnp.bfloat16)

    return {
        "wzT": wzT,
        "wsc": aug(w_sc, b_sc),
        "wsl": aug(w_sl, b_sl),
        "wadj": w_adj.reshape(loc_out, loc_out).astype(jnp.float32),
        "badj": b_adj.reshape(loc_out, 1).astype(jnp.float32),
        "C": C, "cls_out": cls_out, "loc_out": loc_out,
    }


# ------------------------------ forward pass ----------------------------------
def upchannel_ban_forward(prepared, z_f, x_f):
    C = prepared["C"]
    cls_out = prepared["cls_out"]
    loc_out = prepared["loc_out"]
    B = z_f.shape[0]
    T = cls_out + loc_out

    # the only remaining host-side im2col: 3x3 windows, in bf16.
    pz, Hz, Wz = _im2col(z_f.astype(jnp.bfloat16), 3, 3)     # (B, C*9, Hz*Wz)
    px, Hxo, Wxo = _im2col(x_f.astype(jnp.bfloat16), 3, 3)   # (B, C*9, Hxo*Wxo)

    pzT = jnp.transpose(pz, (0, 2, 1))                       # (B, Mz, Kz)
    pzT = jnp.concatenate(
        [pzT, jnp.ones((B, pzT.shape[1], 1), jnp.bfloat16)], axis=2)
    px = jnp.concatenate(
        [px, jnp.ones((B, 1, px.shape[2]), jnp.bfloat16)], axis=1)

    flat = pallas_fused_ban(
        pzT, px, prepared["wzT"], prepared["wsc"], prepared["wsl"],
        prepared["wadj"], prepared["badj"],
        C=C, cls_out=cls_out, loc_out=loc_out, Hz=Hz, Wz=Wz, Hxo=Hxo, Wxo=Wxo)

    # unflatten the response maps (tiny): pad L0 -> Ho*Wxo, reshape, crop.
    Ho, Wo = Hxo - Hz + 1, Wxo - Wz + 1
    L0 = (Ho - 1) * Wxo + Wo
    full = jnp.pad(flat, ((0, 0), (0, 0), (0, Ho * Wxo - L0)))
    maps = full.reshape(B, T, Ho, Wxo)[:, :, :, :Wo]
    return maps[:, :cls_out], maps[:, cls_out:]


# --------------------------- pure-JAX f32 reference ---------------------------
def _reference_forward(params, z_f, x_f):
    hi = jax.lax.Precision.HIGHEST

    def conv(x, w, b):
        y = jax.lax.conv_general_dilated(
            x, w, (1, 1), "VALID",
            dimension_numbers=("NCHW", "OIHW", "NCHW"), precision=hi)
        return y + b[None, :, None, None]

    def xcorr_fast_ref(x, kernel):
        B, C, H, W = x.shape
        out_ch = kernel.shape[1] // C
        pk = kernel.reshape(B * out_ch, C, kernel.shape[2], kernel.shape[3])
        px = x.reshape(1, B * C, H, W)
        po = jax.lax.conv_general_dilated(
            px, pk, (1, 1), "VALID",
            dimension_numbers=("NCHW", "OIHW", "NCHW"),
            feature_group_count=B, precision=hi)
        return po.reshape(B, out_ch, po.shape[2], po.shape[3])

    cls_kernel = conv(z_f, *params["template_cls"])
    loc_kernel = conv(z_f, *params["template_loc"])
    cls_feature = conv(x_f, *params["search_cls"])
    loc_feature = conv(x_f, *params["search_loc"])
    cls = xcorr_fast_ref(cls_feature, cls_kernel)
    loc = conv(xcorr_fast_ref(loc_feature, loc_kernel), *params["loc_adjust"])
    return cls, loc


# ----------------------------------- main -------------------------------------
if __name__ == "__main__":
    key = jax.random.PRNGKey(0)
    kz, kx, kp = jax.random.split(key, 3)

    B, C = 2, 32                        # small synthetic analogue of feature_in=256
    cls_out = 2
    z_f = jax.random.normal(kz, (B, C, 6, 6), jnp.float32)    # template feature, NCHW
    x_f = jax.random.normal(kx, (B, C, 12, 12), jnp.float32)  # search feature, NCHW

    params = init_upchannel_ban_params(kp, feature_in=C, cls_out_channels=cls_out)
    prepared = prepare_ban_params(params)        # one-time, outside the jitted path

    fwd = jax.jit(functools.partial(upchannel_ban_forward, prepared))
    cls, loc = fwd(z_f, x_f)
    jax.block_until_ready((cls, loc))

    # z: 6->4 after 3x3 conv; x: 12->10; xcorr: 10-4+1=7
    assert cls.shape == (B, cls_out, 7, 7), cls.shape
    assert loc.shape == (B, 4, 7, 7), loc.shape
    assert bool(jnp.all(jnp.isfinite(cls))) and bool(jnp.all(jnp.isfinite(loc)))

    # correctness vs pure-JAX f32 reference (loose tolerance: bf16 MXU inputs)
    cls_ref, loc_ref = _reference_forward(params, z_f, x_f)

    def rel_err(a, b):
        return float(jnp.max(jnp.abs(a - b)) / (jnp.max(jnp.abs(b)) + 1e-6))

    assert rel_err(cls, cls_ref) < 0.1, ("cls mismatch", rel_err(cls, cls_ref))
    assert rel_err(loc, loc_ref) < 0.1, ("loc mismatch", rel_err(loc, loc_ref))

    print("KERNEL_OK")
</pallas_src>

<mosaic_0001>
module attributes {stable_mosaic.version = 11 : i64} {
  func.func @_fused_ban_kernel(%arg0: i32, %arg1: memref<1x16x289xbf16, #tpu.memory_space<vmem>>, %arg2: memref<1x289x100xbf16, #tpu.memory_space<vmem>>, %arg3: memref<289x192xbf16, #tpu.memory_space<vmem>>, %arg4: memref<32x289xbf16, #tpu.memory_space<vmem>>, %arg5: memref<32x289xbf16, #tpu.memory_space<vmem>>, %arg6: memref<4x4xf32, #tpu.memory_space<vmem>>, %arg7: memref<4x1xf32, #tpu.memory_space<vmem>>, %arg8: memref<1x6x67xf32, #tpu.memory_space<vmem>>) attributes {dimension_semantics = [#tpu.dimension_semantics<parallel>], iteration_bounds = array<i64: 2>, scalar_prefetch = 0 : i64, scratch_operands = 0 : i64, tpu.core_type = #tpu.core_type<tc>, window_params = [{transform_indices = @transform_0, window_bounds = array<i64: 1, 16, 289>}, {transform_indices = @transform_1, window_bounds = array<i64: 1, 289, 100>}, {pipeline_mode = #tpu.pipeline_mode<synchronous>, transform_indices = @transform_2, window_bounds = array<i64: 289, 192>}, {pipeline_mode = #tpu.pipeline_mode<synchronous>, transform_indices = @transform_3, window_bounds = array<i64: 32, 289>}, {pipeline_mode = #tpu.pipeline_mode<synchronous>, transform_indices = @transform_4, window_bounds = array<i64: 32, 289>}, {pipeline_mode = #tpu.pipeline_mode<synchronous>, transform_indices = @transform_5, window_bounds = array<i64: 4, 4>}, {pipeline_mode = #tpu.pipeline_mode<synchronous>, transform_indices = @transform_6, window_bounds = array<i64: 4, 1>}, {transform_indices = @transform_7, window_bounds = array<i64: 1, 6, 67>}]} {
    %c0 = arith.constant 0 : index
    %c0_0 = arith.constant 0 : index
    %c0_1 = arith.constant 0 : index
    %0 = vector.load %arg1[%c0, %c0_0, %c0_1] : memref<1x16x289xbf16, #tpu.memory_space<vmem>>, vector<1x16x289xbf16>
    %1 = vector.shape_cast %0 : vector<1x16x289xbf16> to vector<16x289xbf16>
    %c0_2 = arith.constant 0 : index
    %c0_3 = arith.constant 0 : index
    %2 = vector.load %arg3[%c0_2, %c0_3] : memref<289x192xbf16, #tpu.memory_space<vmem>>, vector<289x192xbf16>
    %cst = arith.constant dense<0.000000e+00> : vector<16x192xf32>
    %3 = tpu.matmul %1, %2, %cst {dimension_numbers = #tpu.dot_dimension_numbers<[1], [0], [0], [1], [0, 0, 1, 1], [], []>} : vector<16x289xbf16>, vector<289x192xbf16>, vector<16x192xf32> -> vector<16x192xf32>
    %4 = vector.extract_strided_slice %3 {offsets = [0, 0], sizes = [16, 32], strides = [1, 1]} : vector<16x192xf32> to vector<16x32xf32>
    %5 = vector.extract_strided_slice %3 {offsets = [0, 32], sizes = [16, 32], strides = [1, 1]} : vector<16x192xf32> to vector<16x32xf32>
    %6 = vector.extract_strided_slice %3 {offsets = [0, 64], sizes = [16, 32], strides = [1, 1]} : vector<16x192xf32> to vector<16x32xf32>
    %7 = vector.extract_strided_slice %3 {offsets = [0, 96], sizes = [16, 32], strides = [1, 1]} : vector<16x192xf32> to vector<16x32xf32>
    %8 = vector.extract_strided_slice %3 {offsets = [0, 128], sizes = [16, 32], strides = [1, 1]} : vector<16x192xf32> to vector<16x32xf32>
    %9 = vector.extract_strided_slice %3 {offsets = [0, 160], sizes = [16, 32], strides = [1, 1]} : vector<16x192xf32> to vector<16x32xf32>
    %10 = tpu.concatenate %4, %5 in 0 : vector<16x32xf32>, vector<16x32xf32> -> vector<32x32xf32>
    %11 = arith.truncf %10 : vector<32x32xf32> to vector<32x32xbf16>
    %12 = tpu.concatenate %6, %7, %8, %9 in 0 : vector<16x32xf32>, vector<16x32xf32>, vector<16x32xf32>, vector<16x32xf32> -> vector<64x32xf32>
    %13 = arith.truncf %12 : vector<64x32xf32> to vector<64x32xbf16>
    %c0_4 = arith.constant 0 : index
    %c0_5 = arith.constant 0 : index
    %14 = vector.load %arg4[%c0_4, %c0_5] : memref<32x289xbf16, #tpu.memory_space<vmem>>, vector<32x289xbf16>
    %cst_6 = arith.constant dense<0.000000e+00> : vector<32x289xf32>
    %15 = tpu.matmul %11, %14, %cst_6 {dimension_numbers = #tpu.dot_dimension_numbers<[1], [0], [0], [1], [0, 0, 1, 1], [], []>} : vector<32x32xbf16>, vector<32x289xbf16>, vector<32x289xf32> -> vector<32x289xf32>
    %c0_7 = arith.constant 0 : index
    %c0_8 = arith.constant 0 : index
    %16 = vector.load %arg5[%c0_7, %c0_8] : memref<32x289xbf16, #tpu.memory_space<vmem>>, vector<32x289xbf16>
    %cst_9 = arith.constant dense<0.000000e+00> : vector<64x289xf32>
    %17 = tpu.matmul %13, %16, %cst_9 {dimension_numbers = #tpu.dot_dimension_numbers<[1], [0], [0], [1], [0, 0, 1, 1], [], []>} : vector<64x32xbf16>, vector<32x289xbf16>, vector<64x289xf32> -> vector<64x289xf32>
    %18 = tpu.concatenate %15, %17 in 0 : vector<32x289xf32>, vector<64x289xf32> -> vector<96x289xf32>
    %19 = arith.truncf %18 : vector<96x289xf32> to vector<96x289xbf16>
    %c0_10 = arith.constant 0 : index
    %c0_11 = arith.constant 0 : index
    %c0_12 = arith.constant 0 : index
    %20 = vector.load %arg2[%c0_10, %c0_11, %c0_12] : memref<1x289x100xbf16, #tpu.memory_space<vmem>>, vector<1x289x100xbf16>
    %21 = vector.shape_cast %20 : vector<1x289x100xbf16> to vector<289x100xbf16>
    %cst_13 = arith.constant dense<0.000000e+00> : vector<96x100xf32>
    %22 = tpu.matmul %19, %21, %cst_13 {dimension_numbers = #tpu.dot_dimension_numbers<[1], [0], [0], [1], [0, 0, 1, 1], [], []>} : vector<96x289xbf16>, vector<289x100xbf16>, vector<96x100xf32> -> vector<96x100xf32>
    %cst_14 = arith.constant 0.000000e+00 : f32
    %23 = vector.broadcast %cst_14 : f32 to vector<1x67xf32>
    %24 = vector.extract_strided_slice %22 {offsets = [0, 0], sizes = [1, 67], strides = [1, 1]} : vector<96x100xf32> to vector<1x67xf32>
    %25 = arith.addf %23, %24 : vector<1x67xf32>
    %26 = vector.extract_strided_slice %22 {offsets = [1, 1], sizes = [1, 67], strides = [1, 1]} : vector<96x100xf32> to vector<1x67xf32>
    %27 = arith.addf %25, %26 : vector<1x67xf32>
    %28 = vector.extract_strided_slice %22 {offsets = [2, 2], sizes = [1, 67], strides = [1, 1]} : vector<96x100xf32> to vector<1x67xf32>
    %29 = arith.addf %27, %28 : vector<1x67xf32>
    %30 = vector.extract_strided_slice %22 {offsets = [3, 3], sizes = [1, 67], strides = [1, 1]} : vector<96x100xf32> to vector<1x67xf32>
    %31 = arith.addf %29, %30 : vector<1x67xf32>
    %32 = vector.extract_strided_slice %22 {offsets = [4, 10], sizes = [1, 67], strides = [1, 1]} : vector<96x100xf32> to vector<1x67xf32>
    %33 = arith.addf %31, %32 : vector<1x67xf32>
    %34 = vector.extract_strided_slice %22 {offsets = [5, 11], sizes = [1, 67], strides = [1, 1]} : vector<96x100xf32> to vector<1x67xf32>
    %35 = arith.addf %33, %34 : vector<1x67xf32>
    %36 = vector.extract_strided_slice %22 {offsets = [6, 12], sizes = [1, 67], strides = [1, 1]} : vector<96x100xf32> to vector<1x67xf32>
    %37 = arith.addf %35, %36 : vector<1x67xf32>
    %38 = vector.extract_strided_slice %22 {offsets = [7, 13], sizes = [1, 67], strides = [1, 1]} : vector<96x100xf32> to vector<1x67xf32>
    %39 = arith.addf %37, %38 : vector<1x67xf32>
    %40 = vector.extract_strided_slice %22 {offsets = [8, 20], sizes = [1, 67], strides = [1, 1]} : vector<96x100xf32> to vector<1x67xf32>
    %41 = arith.addf %39, %40 : vector<1x67xf32>
    %42 = vector.extract_strided_slice %22 {offsets = [9, 21], sizes = [1, 67], strides = [1, 1]} : vector<96x100xf32> to vector<1x67xf32>
    %43 = arith.addf %41, %42 : vector<1x67xf32>
    %44 = vector.extract_strided_slice %22 {offsets = [10, 22], sizes = [1, 67], strides = [1, 1]} : vector<96x100xf32> to vector<1x67xf32>
    %45 = arith.addf %43, %44 : vector<1x67xf32>
    %46 = vector.extract_strided_slice %22 {offsets = [11, 23], sizes = [1, 67], strides = [1, 1]} : vector<96x100xf32> to vector<1x67xf32>
    %47 = arith.addf %45, %46 : vector<1x67xf32>
    %48 = vector.extract_strided_slice %22 {offsets = [12, 30], sizes = [1, 67], strides = [1, 1]} : vector<96x100xf32> to vector<1x67xf32>
    %49 = arith.addf %47, %48 : vector<1x67xf32>
    %50 = vector.extract_strided_slice %22 {offsets = [13, 31], sizes = [1, 67], strides = [1, 1]} : vector<96x100xf32> to vector<1x67xf32>
    %51 = arith.addf %49, %50 : vector<1x67xf32>
    %52 = vector.extract_strided_slice %22 {offsets = [14, 32], sizes = [1, 67], strides = [1, 1]} : vector<96x100xf32> to vector<1x67xf32>
    %53 = arith.addf %51, %52 : vector<1x67xf32>
    %54 = vector.extract_strided_slice %22 {offsets = [15, 33], sizes = [1, 67], strides = [1, 1]} : vector<96x100xf32> to vector<1x67xf32>
    %55 = arith.addf %53, %54 : vector<1x67xf32>
    %cst_15 = arith.constant 0.000000e+00 : f32
    %56 = vector.broadcast %cst_15 : f32 to vector<1x67xf32>
    %57 = vector.extract_strided_slice %22 {offsets = [16, 0], sizes = [1, 67], strides = [1, 1]} : vector<96x100xf32> to vector<1x67xf32>
    %58 = arith.addf %56, %57 : vector<1x67xf32>
    %59 = vector.extract_strided_slice %22 {offsets = [17, 1], sizes = [1, 67], strides = [1, 1]} : vector<96x100xf32> to vector<1x67xf32>
    %60 = arith.addf %58, %59 : vector<1x67xf32>
    %61 = vector.extract_strided_slice %22 {offsets = [18, 2], sizes = [1, 67], strides = [1, 1]} : vector<96x100xf32> to vector<1x67xf32>
    %62 = arith.addf %60, %61 : vector<1x67xf32>
    %63 = vector.extract_strided_slice %22 {offsets = [19, 3], sizes = [1, 67], strides = [1, 1]} : vector<96x100xf32> to vector<1x67xf32>
    %64 = arith.addf %62, %63 : vector<1x67xf32>
    %65 = vector.extract_strided_slice %22 {offsets = [20, 10], sizes = [1, 67], strides = [1, 1]} : vector<96x100xf32> to vector<1x67xf32>
    %66 = arith.addf %64, %65 : vector<1x67xf32>
    %67 = vector.extract_strided_slice %22 {offsets = [21, 11], sizes = [1, 67], strides = [1, 1]} : vector<96x100xf32> to vector<1x67xf32>
    %68 = arith.addf %66, %67 : vector<1x67xf32>
    %69 = vector.extract_strided_slice %22 {offsets = [22, 12], sizes = [1, 67], strides = [1, 1]} : vector<96x100xf32> to vector<1x67xf32>
    %70 = arith.addf %68, %69 : vector<1x67xf32>
    %71 = vector.extract_strided_slice %22 {offsets = [23, 13], sizes = [1, 67], strides = [1, 1]} : vector<96x100xf32> to vector<1x67xf32>
    %72 = arith.addf %70, %71 : vector<1x67xf32>
    %73 = vector.extract_strided_slice %22 {offsets = [24, 20], sizes = [1, 67], strides = [1, 1]} : vector<96x100xf32> to vector<1x67xf32>
    %74 = arith.addf %72, %73 : vector<1x67xf32>
    %75 = vector.extract_strided_slice %22 {offsets = [25, 21], sizes = [1, 67], strides = [1, 1]} : vector<96x100xf32> to vector<1x67xf32>
    %76 = arith.addf %74, %75 : vector<1x67xf32>
    %77 = vector.extract_strided_slice %22 {offsets = [26, 22], sizes = [1, 67], strides = [1, 1]} : vector<96x100xf32> to vector<1x67xf32>
    %78 = arith.addf %76, %77 : vector<1x67xf32>
    %79 = vector.extract_strided_slice %22 {offsets = [27, 23], sizes = [1, 67], strides = [1, 1]} : vector<96x100xf32> to vector<1x67xf32>
    %80 = arith.addf %78, %79 : vector<1x67xf32>
    %81 = vector.extract_strided_slice %22 {offsets = [28, 30], sizes = [1, 67], strides = [1, 1]} : vector<96x100xf32> to vector<1x67xf32>
    %82 = arith.addf %80, %81 : vector<1x67xf32>
    %83 = vector.extract_strided_slice %22 {offsets = [29, 31], sizes = [1, 67], strides = [1, 1]} : vector<96x100xf32> to vector<1x67xf32>
    %84 = arith.addf %82, %83 : vector<1x67xf32>
    %85 = vector.extract_strided_slice %22 {offsets = [30, 32], sizes = [1, 67], strides = [1, 1]} : vector<96x100xf32> to vector<1x67xf32>
    %86 = arith.addf %84, %85 : vector<1x67xf32>
    %87 = vector.extract_strided_slice %22 {offsets = [31, 33], sizes = [1, 67], strides = [1, 1]} : vector<96x100xf32> to vector<1x67xf32>
    %88 = arith.addf %86, %87 : vector<1x67xf32>
    %cst_16 = arith.constant 0.000000e+00 : f32
    %89 = vector.broadcast %cst_16 : f32 to vector<1x67xf32>
    %90 = vector.extract_strided_slice %22 {offsets = [32, 0], sizes = [1, 67], strides = [1, 1]} : vector<96x100xf32> to vector<1x67xf32>
    %91 = arith.addf %89, %90 : vector<1x67xf32>
    %92 = vector.extract_strided_slice %22 {offsets = [33, 1], sizes = [1, 67], strides = [1, 1]} : vector<96x100xf32> to vector<1x67xf32>
    %93 = arith.addf %91, %92 : vector<1x67xf32>
    %94 = vector.extract_strided_slice %22 {offsets = [34, 2], sizes = [1, 67], strides = [1, 1]} : vector<96x100xf32> to vector<1x67xf32>
    %95 = arith.addf %93, %94 : vector<1x67xf32>
    %96 = vector.extract_strided_slice %22 {offsets = [35, 3], sizes = [1, 67], strides = [1, 1]} : vector<96x100xf32> to vector<1x67xf32>
    %97 = arith.addf %95, %96 : vector<1x67xf32>
    %98 = vector.extract_strided_slice %22 {offsets = [36, 10], sizes = [1, 67], strides = [1, 1]} : vector<96x100xf32> to vector<1x67xf32>
    %99 = arith.addf %97, %98 : vector<1x67xf32>
    %100 = vector.extract_strided_slice %22 {offsets = [37, 11], sizes = [1, 67], strides = [1, 1]} : vector<96x100xf32> to vector<1x67xf32>
    %101 = arith.addf %99, %100 : vector<1x67xf32>
    %102 = vector.extract_strided_slice %22 {offsets = [38, 12], sizes = [1, 67], strides = [1, 1]} : vector<96x100xf32> to vector<1x67xf32>
    %103 = arith.addf %101, %102 : vector<1x67xf32>
    %104 = vector.extract_strided_slice %22 {offsets = [39, 13], sizes = [1, 67], strides = [1, 1]} : vector<96x100xf32> to vector<1x67xf32>
    %105 = arith.addf %103, %104 : vector<1x67xf32>
    %106 = vector.extract_strided_slice %22 {offsets = [40, 20], sizes = [1, 67], strides = [1, 1]} : vector<96x100xf32> to vector<1x67xf32>
    %107 = arith.addf %105, %106 : vector<1x67xf32>
    %108 = vector.extract_strided_slice %22 {offsets = [41, 21], sizes = [1, 67], strides = [1, 1]} : vector<96x100xf32> to vector<1x67xf32>
    %109 = arith.addf %107, %108 : vector<1x67xf32>
    %110 = vector.extract_strided_slice %22 {offsets = [42, 22], sizes = [1, 67], strides = [1, 1]} : vector<96x100xf32> to vector<1x67xf32>
    %111 = arith.addf %109, %110 : vector<1x67xf32>
    %112 = vector.extract_strided_slice %22 {offsets = [43, 23], sizes = [1, 67], strides = [1, 1]} : vector<96x100xf32> to vector<1x67xf32>
    %113 = arith.addf %111, %112 : vector<1x67xf32>
    %114 = vector.extract_strided_slice %22 {offsets = [44, 30], sizes = [1, 67], strides = [1, 1]} : vector<96x100xf32> to vector<1x67xf32>
    %115 = arith.addf %113, %114 : vector<1x67xf32>
    %116 = vector.extract_strided_slice %22 {offsets = [45, 31], sizes = [1, 67], strides = [1, 1]} : vector<96x100xf32> to vector<1x67xf32>
    %117 = arith.addf %115, %116 : vector<1x67xf32>
    %118 = vector.extract_strided_slice %22 {offsets = [46, 32], sizes = [1, 67], strides = [1, 1]} : vector<96x100xf32> to vector<1x67xf32>
    %119 = arith.addf %117, %118 : vector<1x67xf32>
    %120 = vector.extract_strided_slice %22 {offsets = [47, 33], sizes = [1, 67], strides = [1, 1]} : vector<96x100xf32> to vector<1x67xf32>
    %121 = arith.addf %119, %120 : vector<1x67xf32>
    %cst_17 = arith.constant 0.000000e+00 : f32
    %122 = vector.broadcast %cst_17 : f32 to vector<1x67xf32>
    %123 = vector.extract_strided_slice %22 {offsets = [48, 0], sizes = [1, 67], strides = [1, 1]} : vector<96x100xf32> to vector<1x67xf32>
    %124 = arith.addf %122, %123 : vector<1x67xf32>
    %125 = vector.extract_strided_slice %22 {offsets = [49, 1], sizes = [1, 67], strides = [1, 1]} : vector<96x100xf32> to vector<1x67xf32>
    %126 = arith.addf %124, %125 : vector<1x67xf32>
    %127 = vector.extract_strided_slice %22 {offsets = [50, 2], sizes = [1, 67], strides = [1, 1]} : vector<96x100xf32> to vector<1x67xf32>
    %128 = arith.addf %126, %127 : vector<1x67xf32>
    %129 = vector.extract_strided_slice %22 {offsets = [51, 3], sizes = [1, 67], strides = [1, 1]} : vector<96x100xf32> to vector<1x67xf32>
    %130 = arith.addf %128, %129 : vector<1x67xf32>
    %131 = vector.extract_strided_slice %22 {offsets = [52, 10], sizes = [1, 67], strides = [1, 1]} : vector<96x100xf32> to vector<1x67xf32>
    %132 = arith.addf %130, %131 : vector<1x67xf32>
    %133 = vector.extract_strided_slice %22 {offsets = [53, 11], sizes = [1, 67], strides = [1, 1]} : vector<96x100xf32> to vector<1x67xf32>
    %134 = arith.addf %132, %133 : vector<1x67xf32>
    %135 = vector.extract_strided_slice %22 {offsets = [54, 12], sizes = [1, 67], strides = [1, 1]} : vector<96x100xf32> to vector<1x67xf32>
    %136 = arith.addf %134, %135 : vector<1x67xf32>
    %137 = vector.extract_strided_slice %22 {offsets = [55, 13], sizes = [1, 67], strides = [1, 1]} : vector<96x100xf32> to vector<1x67xf32>
    %138 = arith.addf %136, %137 : vector<1x67xf32>
    %139 = vector.extract_strided_slice %22 {offsets = [56, 20], sizes = [1, 67], strides = [1, 1]} : vector<96x100xf32> to vector<1x67xf32>
    %140 = arith.addf %138, %139 : vector<1x67xf32>
    %141 = vector.extract_strided_slice %22 {offsets = [57, 21], sizes = [1, 67], strides = [1, 1]} : vector<96x100xf32> to vector<1x67xf32>
    %142 = arith.addf %140, %141 : vector<1x67xf32>
    %143 = vector.extract_strided_slice %22 {offsets = [58, 22], sizes = [1, 67], strides = [1, 1]} : vector<96x100xf32> to vector<1x67xf32>
    %144 = arith.addf %142, %143 : vector<1x67xf32>
    %145 = vector.extract_strided_slice %22 {offsets = [59, 23], sizes = [1, 67], strides = [1, 1]} : vector<96x100xf32> to vector<1x67xf32>
    %146 = arith.addf %144, %145 : vector<1x67xf32>
    %147 = vector.extract_strided_slice %22 {offsets = [60, 30], sizes = [1, 67], strides = [1, 1]} : vector<96x100xf32> to vector<1x67xf32>
    %148 = arith.addf %146, %147 : vector<1x67xf32>
    %149 = vector.extract_strided_slice %22 {offsets = [61, 31], sizes = [1, 67], strides = [1, 1]} : vector<96x100xf32> to vector<1x67xf32>
    %150 = arith.addf %148, %149 : vector<1x67xf32>
    %151 = vector.extract_strided_slice %22 {offsets = [62, 32], sizes = [1, 67], strides = [1, 1]} : vector<96x100xf32> to vector<1x67xf32>
    %152 = arith.addf %150, %151 : vector<1x67xf32>
    %153 = vector.extract_strided_slice %22 {offsets = [63, 33], sizes = [1, 67], strides = [1, 1]} : vector<96x100xf32> to vector<1x67xf32>
    %154 = arith.addf %152, %153 : vector<1x67xf32>
    %cst_18 = arith.constant 0.000000e+00 : f32
    %155 = vector.broadcast %cst_18 : f32 to vector<1x67xf32>
    %156 = vector.extract_strided_slice %22 {offsets = [64, 0], sizes = [1, 67], strides = [1, 1]} : vector<96x100xf32> to vector<1x67xf32>
    %157 = arith.addf %155, %156 : vector<1x67xf32>
    %158 = vector.extract_strided_slice %22 {offsets = [65, 1], sizes = [1, 67], strides = [1, 1]} : vector<96x100xf32> to vector<1x67xf32>
    %159 = arith.addf %157, %158 : vector<1x67xf32>
    %160 = vector.extract_strided_slice %22 {offsets = [66, 2], sizes = [1, 67], strides = [1, 1]} : vector<96x100xf32> to vector<1x67xf32>
    %161 = arith.addf %159, %160 : vector<1x67xf32>
    %162 = vector.extract_strided_slice %22 {offsets = [67, 3], sizes = [1, 67], strides = [1, 1]} : vector<96x100xf32> to vector<1x67xf32>
    %163 = arith.addf %161, %162 : vector<1x67xf32>
    %164 = vector.extract_strided_slice %22 {offsets = [68, 10], sizes = [1, 67], strides = [1, 1]} : vector<96x100xf32> to vector<1x67xf32>
    %165 = arith.addf %163, %164 : vector<1x67xf32>
    %166 = vector.extract_strided_slice %22 {offsets = [69, 11], sizes = [1, 67], strides = [1, 1]} : vector<96x100xf32> to vector<1x67xf32>
    %167 = arith.addf %165, %166 : vector<1x67xf32>
    %168 = vector.extract_strided_slice %22 {offsets = [70, 12], sizes = [1, 67], strides = [1, 1]} : vector<96x100xf32> to vector<1x67xf32>
    %169 = arith.addf %167, %168 : vector<1x67xf32>
    %170 = vector.extract_strided_slice %22 {offsets = [71, 13], sizes = [1, 67], strides = [1, 1]} : vector<96x100xf32> to vector<1x67xf32>
    %171 = arith.addf %169, %170 : vector<1x67xf32>
    %172 = vector.extract_strided_slice %22 {offsets = [72, 20], sizes = [1, 67], strides = [1, 1]} : vector<96x100xf32> to vector<1x67xf32>
    %173 = arith.addf %171, %172 : vector<1x67xf32>
    %174 = vector.extract_strided_slice %22 {offsets = [73, 21], sizes = [1, 67], strides = [1, 1]} : vector<96x100xf32> to vector<1x67xf32>
    %175 = arith.addf %173, %174 : vector<1x67xf32>
    %176 = vector.extract_strided_slice %22 {offsets = [74, 22], sizes = [1, 67], strides = [1, 1]} : vector<96x100xf32> to vector<1x67xf32>
    %177 = arith.addf %175, %176 : vector<1x67xf32>
    %178 = vector.extract_strided_slice %22 {offsets = [75, 23], sizes = [1, 67], strides = [1, 1]} : vector<96x100xf32> to vector<1x67xf32>
    %179 = arith.addf %177, %178 : vector<1x67xf32>
    %180 = vector.extract_strided_slice %22 {offsets = [76, 30], sizes = [1, 67], strides = [1, 1]} : vector<96x100xf32> to vector<1x67xf32>
    %181 = arith.addf %179, %180 : vector<1x67xf32>
    %182 = vector.extract_strided_slice %22 {offsets = [77, 31], sizes = [1, 67], strides = [1, 1]} : vector<96x100xf32> to vector<1x67xf32>
    %183 = arith.addf %181, %182 : vector<1x67xf32>
    %184 = vector.extract_strided_slice %22 {offsets = [78, 32], sizes = [1, 67], strides = [1, 1]} : vector<96x100xf32> to vector<1x67xf32>
    %185 = arith.addf %183, %184 : vector<1x67xf32>
    %186 = vector.extract_strided_slice %22 {offsets = [79, 33], sizes = [1, 67], strides = [1, 1]} : vector<96x100xf32> to vector<1x67xf32>
    %187 = arith.addf %185, %186 : vector<1x67xf32>
    %cst_19 = arith.constant 0.000000e+00 : f32
    %188 = vector.broadcast %cst_19 : f32 to vector<1x67xf32>
    %189 = vector.extract_strided_slice %22 {offsets = [80, 0], sizes = [1, 67], strides = [1, 1]} : vector<96x100xf32> to vector<1x67xf32>
    %190 = arith.addf %188, %189 : vector<1x67xf32>
    %191 = vector.extract_strided_slice %22 {offsets = [81, 1], sizes = [1, 67], strides = [1, 1]} : vector<96x100xf32> to vector<1x67xf32>
    %192 = arith.addf %190, %191 : vector<1x67xf32>
    %193 = vector.extract_strided_slice %22 {offsets = [82, 2], sizes = [1, 67], strides = [1, 1]} : vector<96x100xf32> to vector<1x67xf32>
    %194 = arith.addf %192, %193 : vector<1x67xf32>
    %195 = vector.extract_strided_slice %22 {offsets = [83, 3], sizes = [1, 67], strides = [1, 1]} : vector<96x100xf32> to vector<1x67xf32>
    %196 = arith.addf %194, %195 : vector<1x67xf32>
    %197 = vector.extract_strided_slice %22 {offsets = [84, 10], sizes = [1, 67], strides = [1, 1]} : vector<96x100xf32> to vector<1x67xf32>
    %198 = arith.addf %196, %197 : vector<1x67xf32>
    %199 = vector.extract_strided_slice %22 {offsets = [85, 11], sizes = [1, 67], strides = [1, 1]} : vector<96x100xf32> to vector<1x67xf32>
    %200 = arith.addf %198, %199 : vector<1x67xf32>
    %201 = vector.extract_strided_slice %22 {offsets = [86, 12], sizes = [1, 67], strides = [1, 1]} : vector<96x100xf32> to vector<1x67xf32>
    %202 = arith.addf %200, %201 : vector<1x67xf32>
    %203 = vector.extract_strided_slice %22 {offsets = [87, 13], sizes = [1, 67], strides = [1, 1]} : vector<96x100xf32> to vector<1x67xf32>
    %204 = arith.addf %202, %203 : vector<1x67xf32>
    %205 = vector.extract_strided_slice %22 {offsets = [88, 20], sizes = [1, 67], strides = [1, 1]} : vector<96x100xf32> to vector<1x67xf32>
    %206 = arith.addf %204, %205 : vector<1x67xf32>
    %207 = vector.extract_strided_slice %22 {offsets = [89, 21], sizes = [1, 67], strides = [1, 1]} : vector<96x100xf32> to vector<1x67xf32>
    %208 = arith.addf %206, %207 : vector<1x67xf32>
    %209 = vector.extract_strided_slice %22 {offsets = [90, 22], sizes = [1, 67], strides = [1, 1]} : vector<96x100xf32> to vector<1x67xf32>
    %210 = arith.addf %208, %209 : vector<1x67xf32>
    %211 = vector.extract_strided_slice %22 {offsets = [91, 23], sizes = [1, 67], strides = [1, 1]} : vector<96x100xf32> to vector<1x67xf32>
    %212 = arith.addf %210, %211 : vector<1x67xf32>
    %213 = vector.extract_strided_slice %22 {offsets = [92, 30], sizes = [1, 67], strides = [1, 1]} : vector<96x100xf32> to vector<1x67xf32>
    %214 = arith.addf %212, %213 : vector<1x67xf32>
    %215 = vector.extract_strided_slice %22 {offsets = [93, 31], sizes = [1, 67], strides = [1, 1]} : vector<96x100xf32> to vector<1x67xf32>
    %216 = arith.addf %214, %215 : vector<1x67xf32>
    %217 = vector.extract_strided_slice %22 {offsets = [94, 32], sizes = [1, 67], strides = [1, 1]} : vector<96x100xf32> to vector<1x67xf32>
    %218 = arith.addf %216, %217 : vector<1x67xf32>
    %219 = vector.extract_strided_slice %22 {offsets = [95, 33], sizes = [1, 67], strides = [1, 1]} : vector<96x100xf32> to vector<1x67xf32>
    %220 = arith.addf %218, %219 : vector<1x67xf32>
    %221 = tpu.concatenate %55, %88 in 0 : vector<1x67xf32>, vector<1x67xf32> -> vector<2x67xf32>
    %222 = tpu.concatenate %121, %154, %187, %220 in 0 : vector<1x67xf32>, vector<1x67xf32>, vector<1x67xf32>, vector<1x67xf32> -> vector<4x67xf32>
    %c0_20 = arith.constant 0 : index
    %c0_21 = arith.constant 0 : index
    %223 = vector.load %arg6[%c0_20, %c0_21] : memref<4x4xf32, #tpu.memory_space<vmem>>, vector<4x4xf32>
    %cst_22 = arith.constant dense<0.000000e+00> : vector<4x67xf32>
    %224 = tpu.matmul %223, %222, %cst_22 {dimension_numbers = #tpu.dot_dimension_numbers<[1], [0], [0], [1], [0, 0, 1, 1], [], []>} : vector<4x4xf32>, vector<4x67xf32>, vector<4x67xf32> -> vector<4x67xf32>
    %c0_23 = arith.constant 0 : index
    %c0_24 = arith.constant 0 : index
    %225 = vector.load %arg7[%c0_23, %c0_24] : memref<4x1xf32, #tpu.memory_space<vmem>>, vector<4x1xf32>
    %226 = vector.broadcast %225 : vector<4x1xf32> to vector<4x67xf32>
    %227 = arith.addf %224, %226 : vector<4x67xf32>
    %228 = tpu.concatenate %221, %227 in 0 : vector<2x67xf32>, vector<4x67xf32> -> vector<6x67xf32>
    %c0_25 = arith.constant 0 : index
    %c0_26 = arith.constant 0 : index
    %c0_27 = arith.constant 0 : index
    %229 = vector.load %arg8[%c0_25, %c0_26, %c0_27] : memref<1x6x67xf32, #tpu.memory_space<vmem>>, vector<1x6x67xf32>
    %230 = vector.shape_cast %229 : vector<1x6x67xf32> to vector<6x67xf32>
    %231 = vector.shape_cast %228 : vector<6x67xf32> to vector<1x6x67xf32>
    tpu.vector_store %arg8[%c0_25, %c0_26, %c0_27], %231 {strides = array<i32>} : memref<1x6x67xf32, #tpu.memory_space<vmem>>, vector<1x6x67xf32>,
    return
  }
  func.func @transform_0(%arg0: i32) -> (i32, i32, i32) {
    %c0_i32 = arith.constant 0 : i32
    %c0_i32_0 = arith.constant 0 : i32
    %c0_i32_1 = arith.constant 0 : i32
    return %arg0, %c0_i32, %c0_i32_0 : i32, i32, i32
  }
  func.func @transform_1(%arg0: i32) -> (i32, i32, i32) {
    %c0_i32 = arith.constant 0 : i32
    %c0_i32_0 = arith.constant 0 : i32
    %c0_i32_1 = arith.constant 0 : i32
    return %arg0, %c0_i32, %c0_i32_0 : i32, i32, i32
  }
  func.func @transform_2(%arg0: i32) -> (i32, i32) {
    %c0_i32 = arith.constant 0 : i32
    %c0_i32_0 = arith.constant 0 : i32
    %c0_i32_1 = arith.constant 0 : i32
    return %c0_i32, %c0_i32_0 : i32, i32
  }
  func.func @transform_3(%arg0: i32) -> (i32, i32) {
    %c0_i32 = arith.constant 0 : i32
    %c0_i32_0 = arith.constant 0 : i32
    %c0_i32_1 = arith.constant 0 : i32
    return %c0_i32, %c0_i32_0 : i32, i32
  }
  func.func @transform_4(%arg0: i32) -> (i32, i32) {
    %c0_i32 = arith.constant 0 : i32
    %c0_i32_0 = arith.constant 0 : i32
    %c0_i32_1 = arith.constant 0 : i32
    return %c0_i32, %c0_i32_0 : i32, i32
  }
  func.func @transform_5(%arg0: i32) -> (i32, i32) {
    %c0_i32 = arith.constant 0 : i32
    %c0_i32_0 = arith.constant 0 : i32
    %c0_i32_1 = arith.constant 0 : i32
    return %c0_i32, %c0_i32_0 : i32, i32
  }
  func.func @transform_6(%arg0: i32) -> (i32, i32) {
    %c0_i32 = arith.constant 0 : i32
    %c0_i32_0 = arith.constant 0 : i32
    %c0_i32_1 = arith.constant 0 : i32
    return %c0_i32, %c0_i32_0 : i32, i32
  }
  func.func @transform_7(%arg0: i32) -> (i32, i32, i32) {
    %c0_i32 = arith.constant 0 : i32
    %c0_i32_0 = arith.constant 0 : i32
    %c0_i32_1 = arith.constant 0 : i32
    return %arg0, %c0_i32, %c0_i32_0 : i32, i32, i32
  }
}

</mosaic_0001>

<llo_original>
// kernel: upchannel_ban_forward.1
$region0: #{upchannel_ban_forward.1}
  #allocation0 [shape = 'u32[]', space=smem, size = 0x4, offset = 0x4, fixed_abs, tag = 'smem constant byte address 0x4 - core index']
  #allocation1 [shape = 'u32[144,128]{1,0:T(1,128)}', space=vmem, size = 0x12000, scoped, tag = 'internal scratch']
  %s0 = inlined_call_operand.vmem [shape: bf16[2,16,289], index: 0, kind: input, shape index: {}]
  %s1 = inlined_call_operand.vmem [shape: bf16[2,289,100], index: 1, kind: input, shape index: {}]
  %s2 = inlined_call_operand.vmem [shape: bf16[289,192], index: 2, kind: input, shape index: {}]
  %s3 = inlined_call_operand.vmem [shape: bf16[32,289], index: 3, kind: input, shape index: {}]
  %s4 = inlined_call_operand.vmem [shape: bf16[32,289], index: 4, kind: input, shape index: {}]
  %s5 = inlined_call_operand.vmem [shape: f32[4,4], index: 5, kind: input, shape index: {}]
  %s6 = inlined_call_operand.vmem [shape: f32[4,1], index: 6, kind: input, shape index: {}]
  %s7 = inlined_call_operand.vmem [shape: f32[2,6,67], index: 7, kind: output, shape index: {}]
  %s8 = sld [smem:[#allocation0]]
  $region61: #{upchannel_ban_forward.1} parent=0
    _
  %s10 = ssub.s32 1, %s8
  %s11 = scalar_select 0, %s10, %s8
  loop: start=0, step=1, limit=4
  $region2: #{upchannel_ban_forward.1} parent=0 // loop_pre_header
    _
  $region3: #{upchannel_ban_forward.1} parent=0 // loop_header
    %s13 = sphi 0, %s17
    %p14 = scmp.ge.s32.totalorder %s13, 4
    %s23 = sphi 0, %s25
    %s26 = sphi 0, %s23
    %s27 = sphi 0, %s26
    %s43 = sphi 0, %s27
    %s49 = sphi 0, %s51
    %s52 = sphi 0, %s49
    %s53 = sphi 0, %s52
    %s69 = sphi 0, %s53
    %s73 = sphi 0, %s73
    %s75 = sphi 0, %s73
    %s76 = sphi 0, %s75
    %s90 = sphi 0, %s76
    %s94 = sphi 0, %s94
    %s96 = sphi 0, %s94
    %s97 = sphi 0, %s96
    %s111 = sphi 0, %s97
    %s115 = sphi 0, %s115
    %s117 = sphi 0, %s115
    %s118 = sphi 0, %s117
    %s132 = sphi 0, %s118
    %s136 = sphi 0, %s136
    %s138 = sphi 0, %s136
    %s139 = sphi 0, %s138
    %s153 = sphi 0, %s139
    %s157 = sphi 0, %s157
    %s159 = sphi 0, %s157
    %s160 = sphi 0, %s159
    %s174 = sphi 0, %s160
    %s180 = sphi 0, %s182
    %s183 = sphi 0, %s180
    %s184 = sphi 0, %s183
    %s200 = sphi 0, %s184
  $region4: #{upchannel_ban_forward.1} parent=0 // loop_header_branch
    %16 = sbr.rel (%p14) target = $region8
  $region5: #{upchannel_ban_forward.1} parent=0 // loop_body
    %s18 = ssub.s32 %s13, 1
    %s19 = ssub.s32 %s13, 2
    %s20 = sadd.s32 %s13, 1
    %s21 = ssub.s32 %s13, %s20
    %p22 = scmp.eq.s32.totalorder %s21, 0
    %s24 = sadd.s32 %s23, 1
    %s25 = scalar_select %p22, %s23, %s24
    %p28 = pneg %p22
    %p29 = scmp.eq.s32.totalorder %s13, 1
    %p30 = por %p28, %p29
    %p31 = scmp.ne.s32.totalorder %s23, %s26
    %p32 = scmp.eq.s32.totalorder %s13, 0
    %p33 = por %p31, %p32
    %p34 = scmp.ne.s32.totalorder %s23, %s26
    %p35 = scmp.eq.s32.totalorder %s18, 1
    %p36 = por %p34, %p35
    %p37 = scmp.ne.s32.totalorder %s26, %s27
    %p38 = scmp.eq.s32.totalorder %s18, 0
    %p39 = por %p37, %p38
    %p40 = scmp.ne.s32.totalorder %s26, %s27
    %p41 = scmp.eq.s32.totalorder %s19, 1
    %p42 = por %p40, %p41
    %p44 = scmp.ne.s32.totalorder %s27, %s43
    %p45 = scmp.eq.s32.totalorder %s19, 0
    %p46 = por %p44, %p45
    %s47 = ssub.s32 %s13, %s20
    %p48 = scmp.eq.s32.totalorder %s47, 0
    %s50 = sadd.s32 %s49, 1
    %s51 = scalar_select %p48, %s49, %s50
    %p54 = pneg %p48
    %p55 = scmp.eq.s32.totalorder %s13, 1
    %p56 = por %p54, %p55
    %p57 = scmp.ne.s32.totalorder %s49, %s52
    %p58 = scmp.eq.s32.totalorder %s13, 0
    %p59 = por %p57, %p58
    %p60 = scmp.ne.s32.totalorder %s49, %s52
    %p61 = scmp.eq.s32.totalorder %s18, 1
    %p62 = por %p60, %p61
    %p63 = scmp.ne.s32.totalorder %s52, %s53
    %p64 = scmp.eq.s32.totalorder %s18, 0
    %p65 = por %p63, %p64
    %p66 = scmp.ne.s32.totalorder %s52, %s53
    %p67 = scmp.eq.s32.totalorder %s19, 1
    %p68 = por %p66, %p67
    %p70 = scmp.ne.s32.totalorder %s53, %s69
    %p71 = scmp.eq.s32.totalorder %s19, 0
    %p72 = por %p70, %p71
    %s74 = sadd.s32 %s73, 1
    %p77 = scmp.eq.s32.totalorder %s13, 1
    %p78 = scmp.ne.s32.totalorder %s73, %s75
    %p79 = scmp.eq.s32.totalorder %s13, 0
    %p80 = por %p78, %p79
    %p81 = scmp.ne.s32.totalorder %s73, %s75
    %p82 = scmp.eq.s32.totalorder %s18, 1
    %p83 = por %p81, %p82
    %p84 = scmp.ne.s32.totalorder %s75, %s76
    %p85 = scmp.eq.s32.totalorder %s18, 0
    %p86 = por %p84, %p85
    %p87 = scmp.ne.s32.totalorder %s75, %s76
    %p88 = scmp.eq.s32.totalorder %s19, 1
    %p89 = por %p87, %p88
    %p91 = scmp.ne.s32.totalorder %s76, %s90
    %p92 = scmp.eq.s32.totalorder %s19, 0
    %p93 = por %p91, %p92
    %s95 = sadd.s32 %s94, 1
    %p98 = scmp.eq.s32.totalorder %s13, 1
    %p99 = scmp.ne.s32.totalorder %s94, %s96
    %p100 = scmp.eq.s32.totalorder %s13, 0
    %p101 = por %p99, %p100
    %p102 = scmp.ne.s32.totalorder %s94, %s96
    %p103 = scmp.eq.s32.totalorder %s18, 1
    %p104 = por %p102, %p103
    %p105 = scmp.ne.s32.totalorder %s96, %s97
    %p106 = scmp.eq.s32.totalorder %s18, 0
    %p107 = por %p105, %p106
    %p108 = scmp.ne.s32.totalorder %s96, %s97
    %p109 = scmp.eq.s32.totalorder %s19, 1
    %p110 = por %p108, %p109
    %p112 = scmp.ne.s32.totalorder %s97, %s111
    %p113 = scmp.eq.s32.totalorder %s19, 0
    %p114 = por %p112, %p113
    %s116 = sadd.s32 %s115, 1
    %p119 = scmp.eq.s32.totalorder %s13, 1
    %p120 = scmp.ne.s32.totalorder %s115, %s117
    %p121 = scmp.eq.s32.totalorder %s13, 0
    %p122 = por %p120, %p121
    %p123 = scmp.ne.s32.totalorder %s115, %s117
    %p124 = scmp.eq.s32.totalorder %s18, 1
    %p125 = por %p123, %p124
    %p126 = scmp.ne.s32.totalorder %s117, %s118
    %p127 = scmp.eq.s32.totalorder %s18, 0
    %p128 = por %p126, %p127
    %p129 = scmp.ne.s32.totalorder %s117, %s118
    %p130 = scmp.eq.s32.totalorder %s19, 1
    %p131 = por %p129, %p130
    %p133 = scmp.ne.s32.totalorder %s118, %s132
    %p134 = scmp.eq.s32.totalorder %s19, 0
    %p135 = por %p133, %p134
    %s137 = sadd.s32 %s136, 1
    %p140 = scmp.eq.s32.totalorder %s13, 1
    %p141 = scmp.ne.s32.totalorder %s136, %s138
    %p142 = scmp.eq.s32.totalorder %s13, 0
    %p143 = por %p141, %p142
    %p144 = scmp.ne.s32.totalorder %s136, %s138
    %p145 = scmp.eq.s32.totalorder %s18, 1
    %p146 = por %p144, %p145
    %p147 = scmp.ne.s32.totalorder %s138, %s139
    %p148 = scmp.eq.s32.totalorder %s18, 0
    %p149 = por %p147, %p148
    %p150 = scmp.ne.s32.totalorder %s138, %s139
    %p151 = scmp.eq.s32.totalorder %s19, 1
    %p152 = por %p150, %p151
    %p154 = scmp.ne.s32.totalorder %s139, %s153
    %p155 = scmp.eq.s32.totalorder %s19, 0
    %p156 = por %p154, %p155
    %s158 = sadd.s32 %s157, 1
    %p161 = scmp.eq.s32.totalorder %s13, 1
    %p162 = scmp.ne.s32.totalorder %s157, %s159
    %p163 = scmp.eq.s32.totalorder %s13, 0
    %p164 = por %p162, %p163
    %p165 = scmp.ne.s32.totalorder %s157, %s159
    %p166 = scmp.eq.s32.totalorder %s18, 1
    %p167 = por %p165, %p166
    %p168 = scmp.ne.s32.totalorder %s159, %s160
    %p169 = scmp.eq.s32.totalorder %s18, 0
    %p170 = por %p168, %p169
    %p171 = scmp.ne.s32.totalorder %s159, %s160
    %p172 = scmp.eq.s32.totalorder %s19, 1
    %p173 = por %p171, %p172
    %p175 = scmp.ne.s32.totalorder %s160, %s174
    %p176 = scmp.eq.s32.totalorder %s19, 0
    %p177 = por %p175, %p176
    %s178 = ssub.s32 %s13, %s20
    %p179 = scmp.eq.s32.totalorder %s178, 0
    %s181 = sadd.s32 %s180, 1
    %s182 = scalar_select %p179, %s180, %s181
    %p185 = pneg %p179
    %p186 = scmp.eq.s32.totalorder %s13, 1
    %p187 = por %p185, %p186
    %p188 = scmp.ne.s32.totalorder %s180, %s183
    %p189 = scmp.eq.s32.totalorder %s13, 0
    %p190 = por %p188, %p189
    %p191 = scmp.ne.s32.totalorder %s180, %s183
    %p192 = scmp.eq.s32.totalorder %s18, 1
    %p193 = por %p191, %p192
    %p194 = scmp.ne.s32.totalorder %s183, %s184
    %p195 = scmp.eq.s32.totalorder %s18, 0
    %p196 = por %p194, %p195
    %p197 = scmp.ne.s32.totalorder %s183, %s184
    %p198 = scmp.eq.s32.totalorder %s19, 1
    %p199 = por %p197, %p198
    %p201 = scmp.ne.s32.totalorder %s184, %s200
    %p202 = scmp.eq.s32.totalorder %s19, 0
    %p203 = por %p201, %p202
    %p204 = scmp.le.s32.totalorder 1, %s13
    %p205 = scmp.lt.s32.totalorder %s13, 3
    %p206 = pnand %p204, %p205
    %p207 = pneg %p206
    // Predicated region
    $region9: #{upchannel_ban_forward.1} parent=5 // pred_check
      _
    $region10: #{upchannel_ban_forward.1} parent=5 // pred_check_branch
      %209 = sbr.rel (%p206) target = $region12
    $region11: #{upchannel_ban_forward.1} parent=5 // pred_region
      %s210 = ssub.s32 %s13, 1
      // Predicated region
      $region13: #{upchannel_ban_forward.1} parent=11 // pred_check
        %p211 = pneg %p86
      $region14: #{upchannel_ban_forward.1} parent=11 // pred_check_branch
        %213 = sbr.rel (%p211) target = $region16
      $region15: #{upchannel_ban_forward.1} parent=11 // pred_region
        _
      $region16: #{upchannel_ban_forward.1} parent=11 // pred_fallthru
        _
      // Predicated region
      $region17: #{upchannel_ban_forward.1} parent=11 // pred_check
        %p214 = pneg %p107
      $region18: #{upchannel_ban_forward.1} parent=11 // pred_check_branch
        %216 = sbr.rel (%p214) target = $region20
      $region19: #{upchannel_ban_forward.1} parent=11 // pred_region
        _
      $region20: #{upchannel_ban_forward.1} parent=11 // pred_fallthru
        _
      // Predicated region
      $region21: #{upchannel_ban_forward.1} parent=11 // pred_check
        %p217 = pneg %p128
      $region22: #{upchannel_ban_forward.1} parent=11 // pred_check_branch
        %219 = sbr.rel (%p217) target = $region24
      $region23: #{upchannel_ban_forward.1} parent=11 // pred_region
        _
      $region24: #{upchannel_ban_forward.1} parent=11 // pred_fallthru
        _
      // Predicated region
      $region25: #{upchannel_ban_forward.1} parent=11 // pred_check
        %p220 = pneg %p149
      $region26: #{upchannel_ban_forward.1} parent=11 // pred_check_branch
        %222 = sbr.rel (%p220) target = $region28
      $region27: #{upchannel_ban_forward.1} parent=11 // pred_region
        _
      $region28: #{upchannel_ban_forward.1} parent=11 // pred_fallthru
        _
      // Predicated region
      $region29: #{upchannel_ban_forward.1} parent=11 // pred_check
        %p223 = pneg %p170
      $region30: #{upchannel_ban_forward.1} parent=11 // pred_check_branch
        %225 = sbr.rel (%p223) target = $region32
      $region31: #{upchannel_ban_forward.1} parent=11 // pred_region
        _
      $region32: #{upchannel_ban_forward.1} parent=11 // pred_fallthru
        _
    $region12: #{upchannel_ban_forward.1} parent=5 // pred_fallthru
      _
    %p226 = scmp.lt.s32.totalorder %s13, 2
    // Predicated region
    $region33: #{upchannel_ban_forward.1} parent=5 // pred_check
      %p227 = pneg %p226
    $region34: #{upchannel_ban_forward.1} parent=5 // pred_check_branch
      %229 = sbr.rel (%p227) target = $region36
    $region35: #{upchannel_ban_forward.1} parent=5 // pred_region
      // Predicated region
      $region37: #{upchannel_ban_forward.1} parent=35 // pred_check
        %p230 = pneg %p33
      $region38: #{upchannel_ban_forward.1} parent=35 // pred_check_branch
        %232 = sbr.rel (%p230) target = $region40
      $region39: #{upchannel_ban_forward.1} parent=35 // pred_region
        %p233 = scmp.lt.s32.totalorder %s13, 1
        %s234 = scalar_select %p233, %s13, 1
        %s235 = smul.addr %s234, 6
        %s236 = smul.addr %s235, 4
        %s237 = scalar_lea.vmem %s0, %s236
      $region40: #{upchannel_ban_forward.1} parent=35 // pred_fallthru
        _
      // Predicated region
      $region41: #{upchannel_ban_forward.1} parent=35 // pred_check
        %p238 = pneg %p59
      $region42: #{upchannel_ban_forward.1} parent=35 // pred_check_branch
        %240 = sbr.rel (%p238) target = $region44
      $region43: #{upchannel_ban_forward.1} parent=35 // pred_region
        %p241 = scmp.lt.s32.totalorder %s13, 1
        %s242 = scalar_select %p241, %s13, 1
        %s243 = smul.addr %s242, 37
        %s244 = smul.addr %s243, 4
        %s245 = scalar_lea.vmem %s1, %s244
      $region44: #{upchannel_ban_forward.1} parent=35 // pred_fallthru
        _
    $region36: #{upchannel_ban_forward.1} parent=5 // pred_fallthru
      _
    %p246 = scmp.le.s32.totalorder 1, %s13
    %p247 = scmp.lt.s32.totalorder %s13, 3
    %p248 = pnand %p246, %p247
    %p249 = pneg %p248
    // Predicated region
    $region45: #{upchannel_ban_forward.1} parent=5 // pred_check
      _
    $region46: #{upchannel_ban_forward.1} parent=5 // pred_check_branch
      %251 = sbr.rel (%p248) target = $region48
    $region47: #{upchannel_ban_forward.1} parent=5 // pred_region
      %s252 = ssub.s32 %s13, 1
      %p253 = scmp.lt.s32.totalorder %s18, 1
      %s254 = scalar_select %p253, %s18, 1
      %s255 = smul.addr %s254, 6
      %s256 = smul.addr %s255, 4
      %s257 = scalar_lea.vmem %s0, %s256
      %p258 = pneg %p39
      %p259 = pneg %p36
      %p260 = scmp.lt.s32.totalorder %s18, 1
      %s261 = scalar_select %p260, %s18, 1
      %s262 = smul.addr %s261, 37
      %s263 = smul.addr %s262, 4
      %s264 = scalar_lea.vmem %s1, %s263
      %p265 = pneg %p65
      %p266 = pneg %p62
      %p267 = pneg %p86
      %p268 = pneg %p83
      %p269 = pneg %p107
      %p270 = pneg %p104
      %p271 = pneg %p128
      %p272 = pneg %p125
      %p273 = pneg %p149
      %p274 = pneg %p146
      %p275 = pneg %p170
      %p276 = pneg %p167
      %p277 = pneg %p196
      %p278 = pneg %p193
      %p279 = scmp.lt.s32.totalorder %s18, 1
      %s280 = scalar_select %p279, %s18, 1
      %s281 = smul.addr %s280, 8
      %s282 = scalar_lea.vmem %s7, %s281
      %p283 = scmp.lt.s32.totalorder %s18, 1
      %s284 = scalar_select %p283, %s18, 1
      %s285 = smul.addr %s284, 6
      %s286 = smul.addr %s285, 4
      %s287 = scalar_lea.vmem %s0, %s286
      %p288 = scmp.lt.s32.totalorder %s18, 1
      %s289 = scalar_select %p288, %s18, 1
      %s290 = smul.addr %s289, 37
      %s291 = smul.addr %s290, 4
      %s292 = scalar_lea.vmem %s1, %s291
      %p293 = scmp.lt.s32.totalorder %s18, 1
      %s294 = scalar_select %p293, %s18, 1
      %s295 = smul.addr %s294, 8
      %s296 = scalar_lea.vmem %s7, %s295
      %v298 = vld [vmem:[%s287] sm:$0xff]
      %v299 = vld [vmem:[%s287 + $0x8] sm:$0xf]
      %v300 = vld [vmem:[%s287 + $0xc] sm:$0xff]
      %v301 = vld [vmem:[%s287 + $0x14] sm:$0xf]
      %v302 = vld [vmem:[%s2] sm:$0xff]
      %v303 = vld [vmem:[%s2 + $0x8] sm:$0xff]
      %v304 = vld [vmem:[%s2 + $0x10] sm:$0xff]
      %v305 = vld [vmem:[%s2 + $0x18] sm:$0xff]
      %v306 = vld [vmem:[%s2 + $0x20] sm:$0xff]
      %v307 = vld [vmem:[%s2 + $0x28] sm:$0xff]
      %v308 = vld [vmem:[%s2 + $0x30] sm:$0xff]
      %v309 = vld [vmem:[%s2 + $0x38] sm:$0xff]
      %v310 = vld [vmem:[%s2 + $0x40] sm:$0xff]
      %v311 = vld [vmem:[%s2 + $0x48] sm:$0xff]
      %v312 = vld [vmem:[%s2 + $0x50] sm:$0xff]
      %v313 = vld [vmem:[%s2 + $0x58] sm:$0xff]
      %v314 = vld [vmem:[%s2 + $0x60] sm:$0xff]
      %v315 = vld [vmem:[%s2 + $0x68] sm:$0xff]
      %v316 = vld [vmem:[%s2 + $0x70] sm:$0xff]
      %v317 = vld [vmem:[%s2 + $0x78] sm:$0xff]
      %v318 = vld [vmem:[%s2 + $0x80] sm:$0xff]
      %v319 = vld [vmem:[%s2 + $0x88] sm:$0xff]
      %v320 = vld [vmem:[%s2 + $0x90] sm:$0xff]
      %v321 = vld [vmem:[%s2 + $0x98] sm:$0xff]
      %v322 = vld [vmem:[%s2 + $0xa0] sm:$0xff]
      %v323 = vld [vmem:[%s2 + $0xa8] sm:$0xff]
      %v324 = vld [vmem:[%s2 + $0xb0] sm:$0xff]
      %v325 = vld [vmem:[%s2 + $0xb8] sm:$0xff]
      %v326 = vld [vmem:[%s2 + $0xc0] sm:$0xff]
      %v327 = vld [vmem:[%s2 + $0xc8] sm:$0xff]
      %v328 = vld [vmem:[%s2 + $0xd0] sm:$0xff]
      %v329 = vld [vmem:[%s2 + $0xd8] sm:$0xff]
      %v330 = vld [vmem:[%s2 + $0xe0] sm:$0xff]
      %v331 = vld [vmem:[%s2 + $0xe8] sm:$0xff]
      %v332 = vld [vmem:[%s2 + $0xf0] sm:$0xff]
      %v333 = vld [vmem:[%s2 + $0xf8] sm:$0xff]
      %v334 = vld [vmem:[%s2 + $0x100] sm:$0xff]
      %v335 = vld [vmem:[%s2 + $0x108] sm:$0xff]
      %v336 = vld [vmem:[%s2 + $0x110] sm:$0xff]
      %v337 = vld [vmem:[%s2 + $0x118] sm:$0xff]
      %v338 = vld [vmem:[%s2 + $0x120] sm:$0x11]
      %v343 = vunpack.c.l.b16 %v298
      %v344 = vunpack.c.h.b16 %v298
      %v345 = vunpack.c.l.b16 %v299
      %v346 = vunpack.c.l.b16 %v300
      %v347 = vunpack.c.h.b16 %v300
      %v348 = vunpack.c.l.b16 %v301
      %v349 = vpack.c.b16 %v346, %v343
      %v350 = vpack.c.b16 %v347, %v344
      %v351 = vpack.c.b16 %v348, %v345
      %v391 = vunpack.c.l.b16 %v302
      %v392 = vunpack.c.h.b16 %v302
      %v393 = vunpack.c.l.b16 %v303
      %v394 = vunpack.c.h.b16 %v303
      %v395 = vunpack.c.l.b16 %v304
      %v396 = vunpack.c.h.b16 %v304
      %v397 = vunpack.c.l.b16 %v305
      %v398 = vunpack.c.h.b16 %v305
      %v399 = vunpack.c.l.b16 %v306
      %v400 = vunpack.c.h.b16 %v306
      %v401 = vunpack.c.l.b16 %v307
      %v402 = vunpack.c.h.b16 %v307
      %v403 = vunpack.c.l.b16 %v308
      %v404 = vunpack.c.h.b16 %v308
      %v405 = vunpack.c.l.b16 %v309
      %v406 = vunpack.c.h.b16 %v309
      %v407 = vunpack.c.l.b16 %v310
      %v408 = vunpack.c.h.b16 %v310
      %v409 = vunpack.c.l.b16 %v311
      %v410 = vunpack.c.h.b16 %v311
      %v411 = vunpack.c.l.b16 %v312
      %v412 = vunpack.c.h.b16 %v312
      %v413 = vunpack.c.l.b16 %v313
      %v414 = vunpack.c.h.b16 %v313
      %v415 = vunpack.c.l.b16 %v314
      %v416 = vunpack.c.h.b16 %v314
      %v417 = vunpack.c.l.b16 %v315
      %v418 = vunpack.c.h.b16 %v315
      %v419 = vunpack.c.l.b16 %v316
      %v420 = vunpack.c.h.b16 %v316
      %v421 = vunpack.c.l.b16 %v317
      %v422 = vunpack.c.h.b16 %v317
      %v423 = vunpack.c.l.b16 %v318
      %v424 = vunpack.c.h.b16 %v318
      %v425 = vunpack.c.l.b16 %v319
      %v426 = vunpack.c.h.b16 %v319
      %v427 = vunpack.c.l.b16 %v320
      %v428 = vunpack.c.h.b16 %v320
      %v429 = vunpack.c.l.b16 %v321
      %v430 = vunpack.c.h.b16 %v321
      %v431 = vunpack.c.l.b16 %v322
      %v432 = vunpack.c.h.b16 %v322
      %v433 = vunpack.c.l.b16 %v323
      %v434 = vunpack.c.h.b16 %v323
      %v435 = vunpack.c.l.b16 %v324
      %v436 = vunpack.c.h.b16 %v324
      %v437 = vunpack.c.l.b16 %v325
      %v438 = vunpack.c.h.b16 %v325
      %v439 = vunpack.c.l.b16 %v326
      %v440 = vunpack.c.h.b16 %v326
      %v441 = vunpack.c.l.b16 %v327
      %v442 = vunpack.c.h.b16 %v327
      %v443 = vunpack.c.l.b16 %v328
      %v444 = vunpack.c.h.b16 %v328
      %v445 = vunpack.c.l.b16 %v329
      %v446 = vunpack.c.h.b16 %v329
      %v447 = vunpack.c.l.b16 %v330
      %v448 = vunpack.c.h.b16 %v330
      %v449 = vunpack.c.l.b16 %v331
      %v450 = vunpack.c.h.b16 %v331
      %v451 = vunpack.c.l.b16 %v332
      %v452 = vunpack.c.h.b16 %v332
      %v453 = vunpack.c.l.b16 %v333
      %v454 = vunpack.c.h.b16 %v333
      %v455 = vunpack.c.l.b16 %v334
      %v456 = vunpack.c.h.b16 %v334
      %v457 = vunpack.c.l.b16 %v335
      %v458 = vunpack.c.h.b16 %v335
      %v459 = vunpack.c.l.b16 %v336
      %v460 = vunpack.c.h.b16 %v336
      %v461 = vunpack.c.l.b16 %v337
      %v462 = vunpack.c.h.b16 %v337
      %v463 = vunpack.c.l.b16 %v338
      %v464 = vunpack.c.h.b16 %v338
      %v465 = vpack.c.b16 %v393, %v391
      %v466 = vpack.c.b16 %v394, %v392
      %v467 = vpack.c.b16 %v397, %v395
      %v468 = vpack.c.b16 %v398, %v396
      %v469 = vpack.c.b16 %v401, %v399
      %v470 = vpack.c.b16 %v402, %v400
      %v471 = vpack.c.b16 %v405, %v403
      %v472 = vpack.c.b16 %v406, %v404
      %v473 = vpack.c.b16 %v409, %v407
      %v474 = vpack.c.b16 %v410, %v408
      %v475 = vpack.c.b16 %v413, %v411
      %v476 = vpack.c.b16 %v414, %v412
      %v477 = vpack.c.b16 %v417, %v415
      %v478 = vpack.c.b16 %v418, %v416
      %v479 = vpack.c.b16 %v421, %v419
      %v480 = vpack.c.b16 %v422, %v420
      %v481 = vpack.c.b16 %v425, %v423
      %v482 = vpack.c.b16 %v426, %v424
      %v483 = vpack.c.b16 %v429, %v427
      %v484 = vpack.c.b16 %v430, %v428
      %v485 = vpack.c.b16 %v433, %v431
      %v486 = vpack.c.b16 %v434, %v432
      %v487 = vpack.c.b16 %v437, %v435
      %v488 = vpack.c.b16 %v438, %v436
      %v489 = vpack.c.b16 %v441, %v439
      %v490 = vpack.c.b16 %v442, %v440
      %v491 = vpack.c.b16 %v445, %v443
      %v492 = vpack.c.b16 %v446, %v444
      %v493 = vpack.c.b16 %v449, %v447
      %v494 = vpack.c.b16 %v450, %v448
      %v495 = vpack.c.b16 %v453, %v451
      %v496 = vpack.c.b16 %v454, %v452
      %v497 = vpack.c.b16 %v457, %v455
      %v498 = vpack.c.b16 %v458, %v456
      %v499 = vpack.c.b16 %v461, %v459
      %v500 = vpack.c.b16 %v462, %v460
      %v501 = vpack.c.b16 %v463, %v463
      %v502 = vpack.c.b16 %v464, %v464
      %vm539 = vcmask 269312
      %v541 = vsel %vm539, %v351, 0
      %vm543 = vcmask 1040384
      %v544 = vsel 0, 4294967295, 65535
      %v545 = vsel %vm543, %v544, 0
      %v547 = vand.u32 %v501, %v545
      %v550 = vand.u32 %v502, %v545
      %552 = vmatprep.subr.bf16.mxu0 %v480
      %553 = vmatpush1.bf16.msra.mxu0 %v479
      %554 = vmatprep.subr.bf16.mxu0 %v478
      %555 = vmatpush1.bf16.msra.mxu0 %v477
      %556 = vmatprep.subr.bf16.mxu0 %v476
      %557 = vmatpush1.bf16.msra.mxu0 %v475
      %558 = vmatprep.subr.bf16.mxu0 %v474
      %559 = vmatpush1.bf16.msra.mxu0 %v473
      %560 = vmatprep.subr.bf16.mxu0 %v472
      %561 = vmatpush1.bf16.msra.mxu0 %v471
      %562 = vmatprep.subr.bf16.mxu0 %v470
      %563 = vmatpush1.bf16.msra.mxu0 %v469
      %564 = vmatprep.subr.bf16.mxu0 %v468
      %565 = vmatpush1.bf16.msra.mxu0 %v467
      %566 = vmatprep.subr.bf16.mxu0 %v466
      %567 = vmatpush1.bf16.msra.mxu0 %v465
      %568 = vmatprep.subr.bf16.mxu0 %v496
      %569 = vmatpush2.bf16.msra.mxu0 %v495
      %570 = vmatprep.subr.bf16.mxu0 %v494
      %571 = vmatpush2.bf16.msra.mxu0 %v493
      %572 = vmatprep.subr.bf16.mxu0 %v492
      %573 = vmatpush2.bf16.msra.mxu0 %v491
      %574 = vmatprep.subr.bf16.mxu0 %v490
      %575 = vmatpush2.bf16.msra.mxu0 %v489
      %576 = vmatprep.subr.bf16.mxu0 %v488
      %577 = vmatpush2.bf16.msra.mxu0 %v487
      %578 = vmatprep.subr.bf16.mxu0 %v486
      %579 = vmatpush2.bf16.msra.mxu0 %v485
      %580 = vmatprep.subr.bf16.mxu0 %v484
      %581 = vmatpush2.bf16.msra.mxu0 %v483
      %582 = vmatprep.subr.bf16.mxu0 %v482
      %583 = vmatpush2.bf16.msra.mxu0 %v481
      %584 = vmatprep.mubr.bf16.mxu0 %v350
      %585 = vmatmul.mubr.bf16.gmra.mxu0 %v349
      %v586 = vpop.f32.mrf.mxu0
      %v587 = vadd.f32 0.0, %v586
      %v588 = vpop.f32.mrf.mxu0
      %v589 = vadd.f32 0.0, %v588
      %v590 = vpop.f32.mrf.mxu0
      %v591 = vadd.f32 0.0, %v590
      %v592 = vpop.f32.mrf.mxu0
      %v593 = vadd.f32 0.0, %v592
      %594 = vdwg.mxu0
      %595 = vmatprep.subr.bf16.mxu0 0
      %596 = vmatpush1.bf16.msra.mxu0 0
      %597 = vmatprep.subr.bf16.mxu0 0
      %598 = vmatpush1.bf16.msra.mxu0 0
      %599 = vmatprep.subr.bf16.mxu0 0
      %600 = vmatpush1.bf16.msra.mxu0 0
      %601 = vmatprep.subr.bf16.mxu0 0
      %602 = vmatpush1.bf16.msra.mxu0 0
      %603 = vmatprep.subr.bf16.mxu0 0
      %604 = vmatpush1.bf16.msra.mxu0 0
      %605 = vmatprep.subr.bf16.mxu0 %v550
      %606 = vmatpush1.bf16.msra.mxu0 %v547
      %607 = vmatprep.subr.bf16.mxu0 %v500
      %608 = vmatpush1.bf16.msra.mxu0 %v499
      %609 = vmatprep.subr.bf16.mxu0 %v498
      %610 = vmatpush1.bf16.msra.mxu0 %v497
      %611 = vmatprep.subr.bf16.mxu0 0
      %612 = vmatpush2.bf16.msra.mxu0 0
      %613 = vmatprep.subr.bf16.mxu0 0
      %614 = vmatpush2.bf16.msra.mxu0 0
      %615 = vmatprep.subr.bf16.mxu0 0
      %616 = vmatpush2.bf16.msra.mxu0 0
      %617 = vmatprep.subr.bf16.mxu0 0
      %618 = vmatpush2.bf16.msra.mxu0 0
      %619 = vmatprep.subr.bf16.mxu0 0
      %620 = vmatpush2.bf16.msra.mxu0 0
      %621 = vmatprep.subr.bf16.mxu0 0
      %622 = vmatpush2.bf16.msra.mxu0 0
      %623 = vmatprep.subr.bf16.mxu0 0
      %624 = vmatpush2.bf16.msra.mxu0 0
      %625 = vmatprep.subr.bf16.mxu0 0
      %626 = vmatpush2.bf16.msra.mxu0 0
      %627 = vmatprep.mubr.bf16.mxu0 0
      %628 = vmatmul.mubr.bf16.gmra.mxu0 %v541
      %v629 = vpop.f32.mrf.mxu0
      %v630 = vadd.f32 %v587, %v629
      %v631 = vpop.f32.mrf.mxu0
      %v632 = vadd.f32 %v589, %v631
      %v633 = vpop.f32.mrf.mxu0
      %v634 = vadd.f32 %v591, %v633
      %v635 = vpop.f32.mrf.mxu0
      %v636 = vadd.f32 %v593, %v635
      %637 = vdwg.mxu0
      %640 = vrot.lane.b32.xlu0 %v630, 96
      %v641 = vpop.permute.xlu0 %640
      %642 = vrot.lane.b32.xlu0 %v634, 96
      %v643 = vpop.permute.xlu0 %642
      %v646 = vpack.c.bf16 %v634, %v630
      %v647 = vpack.c.bf16 %v643, %v641
      %650 = vrot.lane.b32.xlu0 %v632, 64
      %v651 = vpop.permute.xlu0 %650
      %652 = vrot.lane.b32.xlu0 %v636, 64
      %v653 = vpop.permute.xlu0 %652
      %656 = vrot.lane.b32.xlu0 %v632, 32
      %v657 = vpop.permute.xlu0 %656
      %658 = vrot.lane.b32.xlu0 %v636, 32
      %v659 = vpop.permute.xlu0 %658
      %v662 = vpack.c.bf16 %v653, %v651
      %v663 = vpack.c.bf16 %v659, %v657
      %v664 = vld [vmem:[%s3] sm:$0xff]
      %v665 = vld [vmem:[%s3 + $0x8] sm:$0xf]
      %v666 = vld [vmem:[%s3 + $0xc] sm:$0xff]
      %v667 = vld [vmem:[%s3 + $0x14] sm:$0xf]
      %v668 = vld [vmem:[%s3 + $0x18] sm:$0xff]
      %v669 = vld [vmem:[%s3 + $0x20] sm:$0xf]
      %v670 = vld [vmem:[%s3 + $0x24] sm:$0xff]
      %v671 = vld [vmem:[%s3 + $0x2c] sm:$0xf]
      %v680 = vunpack.c.l.b16 %v664
      %v681 = vunpack.c.h.b16 %v664
      %v682 = vunpack.c.l.b16 %v665
      %v683 = vunpack.c.l.b16 %v666
      %v684 = vunpack.c.h.b16 %v666
      %v685 = vunpack.c.l.b16 %v667
      %v686 = vunpack.c.l.b16 %v668
      %v687 = vunpack.c.h.b16 %v668
      %v688 = vunpack.c.l.b16 %v669
      %v689 = vunpack.c.l.b16 %v670
      %v690 = vunpack.c.h.b16 %v670
      %v691 = vunpack.c.l.b16 %v671
      %v692 = vpack.c.b16 %v683, %v680
      %v693 = vpack.c.b16 %v684, %v681
      %v694 = vpack.c.b16 %v685, %v682
      %v695 = vpack.c.b16 %v689, %v686
      %v696 = vpack.c.b16 %v690, %v687
      %v697 = vpack.c.b16 %v691, %v688
      %vm704 = vcmask 261120
      %v706 = vsel %vm704, %v646, 0
      %v709 = vsel %vm704, %v647, 0
      %711 = vmatprep.subr.bf16.mxu0 0
      %712 = vmatpush1.bf16.msra.mxu0 0
      %713 = vmatprep.subr.bf16.mxu0 0
      %714 = vmatpush1.bf16.msra.mxu0 0
      %715 = vmatprep.subr.bf16.mxu0 0
      %716 = vmatpush1.bf16.msra.mxu0 0
      %717 = vmatprep.subr.bf16.mxu0 0
      %718 = vmatpush1.bf16.msra.mxu0 0
      %719 = vmatprep.subr.bf16.mxu0 0
      %720 = vmatpush1.bf16.msra.mxu0 0
      %721 = vmatprep.subr.bf16.mxu0 0
      %722 = vmatpush1.bf16.msra.mxu0 0
      %723 = vmatprep.subr.bf16.mxu0 %v696
      %724 = vmatpush1.bf16.msra.mxu0 %v695
      %725 = vmatprep.subr.bf16.mxu0 %v693
      %726 = vmatpush1.bf16.msra.mxu0 %v692
      %727 = vmatprep.subr.bf16.mxu0 0
      %728 = vmatpush2.bf16.msra.mxu0 0
      %729 = vmatprep.subr.bf16.mxu0 0
      %730 = vmatpush2.bf16.msra.mxu0 0
      %731 = vmatprep.subr.bf16.mxu0 0
      %732 = vmatpush2.bf16.msra.mxu0 0
      %733 = vmatprep.subr.bf16.mxu0 0
      %734 = vmatpush2.bf16.msra.mxu0 0
      %735 = vmatprep.subr.bf16.mxu0 0
      %736 = vmatpush2.bf16.msra.mxu0 0
      %737 = vmatprep.subr.bf16.mxu0 0
      %738 = vmatpush2.bf16.msra.mxu0 0
      %739 = vmatprep.subr.bf16.mxu0 0
      %740 = vmatpush2.bf16.msra.mxu0 0
      %741 = vmatprep.subr.bf16.mxu0 0
      %742 = vmatpush2.bf16.msra.mxu0 0
      %743 = vmatprep.mubr.bf16.mxu0 0
      %744 = vmatmul.mubr.bf16.gmra.mxu0 %v706
      %v745 = vpop.f32.mrf.mxu0
      %v746 = vadd.f32 0.0, %v745
      %v747 = vpop.f32.mrf.mxu0
      %v748 = vadd.f32 0.0, %v747
      %v749 = vpop.f32.mrf.mxu0
      %v750 = vadd.f32 0.0, %v749
      %v751 = vpop.f32.mrf.mxu0
      %v752 = vadd.f32 0.0, %v751
      %753 = vmatprep.mubr.bf16.mxu0 0
      %754 = vmatmul.mubr.bf16.gmra.mxu0 %v709
      %v755 = vpop.f32.mrf.mxu0
      %v756 = vadd.f32 0.0, %v755
      %v757 = vpop.f32.mrf.mxu0
      %v758 = vadd.f32 0.0, %v757
      %v759 = vpop.f32.mrf.mxu0
      %v760 = vadd.f32 0.0, %v759
      %v761 = vpop.f32.mrf.mxu0
      %v762 = vadd.f32 0.0, %v761
      %763 = vdwg.mxu0
      %764 = vmatprep.subr.bf16.mxu0 0
      %765 = vmatpush1.bf16.msra.mxu0 0
      %766 = vmatprep.subr.bf16.mxu0 0
      %767 = vmatpush1.bf16.msra.mxu0 0
      %768 = vmatprep.subr.bf16.mxu0 0
      %769 = vmatpush1.bf16.msra.mxu0 0
      %770 = vmatprep.subr.bf16.mxu0 0
      %771 = vmatpush1.bf16.msra.mxu0 0
      %772 = vmatprep.subr.bf16.mxu0 0
      %773 = vmatpush1.bf16.msra.mxu0 0
      %774 = vmatprep.subr.bf16.mxu0 0
      %775 = vmatpush1.bf16.msra.mxu0 0
      %776 = vmatprep.subr.bf16.mxu0 0
      %777 = vmatpush1.bf16.msra.mxu0 %v697
      %778 = vmatprep.subr.bf16.mxu0 0
      %779 = vmatpush1.bf16.msra.mxu0 %v694
      %780 = vmatprep.subr.bf16.mxu0 0
      %781 = vmatpush2.bf16.msra.mxu0 0
      %782 = vmatprep.subr.bf16.mxu0 0
      %783 = vmatpush2.bf16.msra.mxu0 0
      %784 = vmatprep.subr.bf16.mxu0 0
      %785 = vmatpush2.bf16.msra.mxu0 0
      %786 = vmatprep.subr.bf16.mxu0 0
      %787 = vmatpush2.bf16.msra.mxu0 0
      %788 = vmatprep.subr.bf16.mxu0 0
      %789 = vmatpush2.bf16.msra.mxu0 0
      %790 = vmatprep.subr.bf16.mxu0 0
      %791 = vmatpush2.bf16.msra.mxu0 0
      %792 = vmatprep.subr.bf16.mxu0 0
      %793 = vmatpush2.bf16.msra.mxu0 0
      %794 = vmatprep.subr.bf16.mxu0 0
      %795 = vmatpush2.bf16.msra.mxu0 0
      %796 = vmatprep.mubr.bf16.mxu0 0
      %797 = vmatmul.mubr.bf16.gmra.mxu0 %v706
      %v798 = vpop.f32.mrf.mxu0
      %v799 = vadd.f32 0.0, %v798
      %v800 = vpop.f32.mrf.mxu0
      %v801 = vpop.f32.mrf.mxu0
      %v802 = vadd.f32 0.0, %v801
      %v803 = vpop.f32.mrf.mxu0
      %804 = vmatprep.mubr.bf16.mxu0 0
      %805 = vmatmul.mubr.bf16.gmra.mxu0 %v709
      %v806 = vpop.f32.mrf.mxu0
      %v807 = vadd.f32 0.0, %v806
      %v808 = vpop.f32.mrf.mxu0
      %v809 = vpop.f32.mrf.mxu0
      %v810 = vadd.f32 0.0, %v809
      %v811 = vpop.f32.mrf.mxu0
      %812 = vdwg.mxu0
      %v813 = vld [vmem:[%s4] sm:$0xff]
      %v814 = vld [vmem:[%s4 + $0x8] sm:$0xf]
      %v815 = vld [vmem:[%s4 + $0xc] sm:$0xff]
      %v816 = vld [vmem:[%s4 + $0x14] sm:$0xf]
      %v817 = vld [vmem:[%s4 + $0x18] sm:$0xff]
      %v818 = vld [vmem:[%s4 + $0x20] sm:$0xf]
      %v819 = vld [vmem:[%s4 + $0x24] sm:$0xff]
      %v820 = vld [vmem:[%s4 + $0x2c] sm:$0xf]
      %825 = vrot.lane.b32.xlu0 %v646, 64
      %v826 = vpop.permute.xlu0 %825
      %827 = vrot.lane.b32.xlu0 %v647, 64
      %v828 = vpop.permute.xlu0 %827
      %829 = vrot.lane.b32.xlu0 %v662, 64
      %v830 = vpop.permute.xlu0 %829
      %831 = vrot.lane.b32.xlu0 %v663, 64
      %v832 = vpop.permute.xlu0 %831
      %v841 = vunpack.c.l.b16 %v813
      %v842 = vunpack.c.h.b16 %v813
      %v843 = vunpack.c.l.b16 %v814
      %v844 = vunpack.c.l.b16 %v815
      %v845 = vunpack.c.h.b16 %v815
      %v846 = vunpack.c.l.b16 %v816
      %v847 = vunpack.c.l.b16 %v817
      %v848 = vunpack.c.h.b16 %v817
      %v849 = vunpack.c.l.b16 %v818
      %v850 = vunpack.c.l.b16 %v819
      %v851 = vunpack.c.h.b16 %v819
      %v852 = vunpack.c.l.b16 %v820
      %v853 = vpack.c.b16 %v844, %v841
      %v854 = vpack.c.b16 %v845, %v842
      %v855 = vpack.c.b16 %v846, %v843
      %v856 = vpack.c.b16 %v850, %v847
      %v857 = vpack.c.b16 %v851, %v848
      %v858 = vpack.c.b16 %v852, %v849
      %v866 = vsel %vm704, %v826, 0
      %v869 = vsel %vm704, %v828, 0
      %v872 = vsel %vm704, %v830, 0
      %v875 = vsel %vm704, %v832, 0
      %877 = vmatprep.subr.bf16.mxu0 0
      %878 = vmatpush1.bf16.msra.mxu0 0
      %879 = vmatprep.subr.bf16.mxu0 0
      %880 = vmatpush1.bf16.msra.mxu0 0
      %881 = vmatprep.subr.bf16.mxu0 0
      %882 = vmatpush1.bf16.msra.mxu0 0
      %883 = vmatprep.subr.bf16.mxu0 0
      %884 = vmatpush1.bf16.msra.mxu0 0
      %885 = vmatprep.subr.bf16.mxu0 0
      %886 = vmatpush1.bf16.msra.mxu0 0
      %887 = vmatprep.subr.bf16.mxu0 0
      %888 = vmatpush1.bf16.msra.mxu0 0
      %889 = vmatprep.subr.bf16.mxu0 %v857
      %890 = vmatpush1.bf16.msra.mxu0 %v856
      %891 = vmatprep.subr.bf16.mxu0 %v854
      %892 = vmatpush1.bf16.msra.mxu0 %v853
      %893 = vmatprep.subr.bf16.mxu0 0
      %894 = vmatpush2.bf16.msra.mxu0 0
      %895 = vmatprep.subr.bf16.mxu0 0
      %896 = vmatpush2.bf16.msra.mxu0 0
      %897 = vmatprep.subr.bf16.mxu0 0
      %898 = vmatpush2.bf16.msra.mxu0 0
      %899 = vmatprep.subr.bf16.mxu0 0
      %900 = vmatpush2.bf16.msra.mxu0 0
      %901 = vmatprep.subr.bf16.mxu0 0
      %902 = vmatpush2.bf16.msra.mxu0 0
      %903 = vmatprep.subr.bf16.mxu0 0
      %904 = vmatpush2.bf16.msra.mxu0 0
      %905 = vmatprep.subr.bf16.mxu0 0
      %906 = vmatpush2.bf16.msra.mxu0 0
      %907 = vmatprep.subr.bf16.mxu0 0
      %908 = vmatpush2.bf16.msra.mxu0 0
      %909 = vmatprep.mubr.bf16.mxu0 0
      %910 = vmatmul.mubr.bf16.gmra.mxu0 %v866
      %v911 = vpop.f32.mrf.mxu0
      %v912 = vadd.f32 0.0, %v911
      %v913 = vpop.f32.mrf.mxu0
      %v914 = vadd.f32 0.0, %v913
      %v915 = vpop.f32.mrf.mxu0
      %v916 = vadd.f32 0.0, %v915
      %v917 = vpop.f32.mrf.mxu0
      %v918 = vadd.f32 0.0, %v917
      %919 = vmatprep.mubr.bf16.mxu0 0
      %920 = vmatmul.mubr.bf16.gmra.mxu0 %v869
      %v921 = vpop.f32.mrf.mxu0
      %v922 = vadd.f32 0.0, %v921
      %v923 = vpop.f32.mrf.mxu0
      %v924 = vadd.f32 0.0, %v923
      %v925 = vpop.f32.mrf.mxu0
      %v926 = vadd.f32 0.0, %v925
      %v927 = vpop.f32.mrf.mxu0
      %v928 = vadd.f32 0.0, %v927
      %929 = vmatprep.mubr.bf16.mxu0 0
      %930 = vmatmul.mubr.bf16.gmra.mxu0 %v872
      %v931 = vpop.f32.mrf.mxu0
      %v932 = vadd.f32 0.0, %v931
      %v933 = vpop.f32.mrf.mxu0
      %v934 = vadd.f32 0.0, %v933
      %v935 = vpop.f32.mrf.mxu0
      %v936 = vadd.f32 0.0, %v935
      %v937 = vpop.f32.mrf.mxu0
      %v938 = vadd.f32 0.0, %v937
      %939 = vmatprep.mubr.bf16.mxu0 0
      %940 = vmatmul.mubr.bf16.gmra.mxu0 %v875
      %v941 = vpop.f32.mrf.mxu0
      %v942 = vadd.f32 0.0, %v941
      %v943 = vpop.f32.mrf.mxu0
      %v944 = vadd.f32 0.0, %v943
      %v945 = vpop.f32.mrf.mxu0
      %v946 = vadd.f32 0.0, %v945
      %v947 = vpop.f32.mrf.mxu0
      %v948 = vadd.f32 0.0, %v947
      %949 = vdwg.mxu0
      %950 = vmatprep.subr.bf16.mxu0 0
      %951 = vmatpush1.bf16.msra.mxu0 0
      %952 = vmatprep.subr.bf16.mxu0 0
      %953 = vmatpush1.bf16.msra.mxu0 0
      %954 = vmatprep.subr.bf16.mxu0 0
      %955 = vmatpush1.bf16.msra.mxu0 0
      %956 = vmatprep.subr.bf16.mxu0 0
      %957 = vmatpush1.bf16.msra.mxu0 0
      %958 = vmatprep.subr.bf16.mxu0 0
      %959 = vmatpush1.bf16.msra.mxu0 0
      %960 = vmatprep.subr.bf16.mxu0 0
      %961 = vmatpush1.bf16.msra.mxu0 0
      %962 = vmatprep.subr.bf16.mxu0 0
      %963 = vmatpush1.bf16.msra.mxu0 %v858
      %964 = vmatprep.subr.bf16.mxu0 0
      %965 = vmatpush1.bf16.msra.mxu0 %v855
      %966 = vmatprep.subr.bf16.mxu0 0
      %967 = vmatpush2.bf16.msra.mxu0 0
      %968 = vmatprep.subr.bf16.mxu0 0
      %969 = vmatpush2.bf16.msra.mxu0 0
      %970 = vmatprep.subr.bf16.mxu0 0
      %971 = vmatpush2.bf16.msra.mxu0 0
      %972 = vmatprep.subr.bf16.mxu0 0
      %973 = vmatpush2.bf16.msra.mxu0 0
      %974 = vmatprep.subr.bf16.mxu0 0
      %975 = vmatpush2.bf16.msra.mxu0 0
      %976 = vmatprep.subr.bf16.mxu0 0
      %977 = vmatpush2.bf16.msra.mxu0 0
      %978 = vmatprep.subr.bf16.mxu0 0
      %979 = vmatpush2.bf16.msra.mxu0 0
      %980 = vmatprep.subr.bf16.mxu0 0
      %981 = vmatpush2.bf16.msra.mxu0 0
      %982 = vmatprep.mubr.bf16.mxu0 0
      %983 = vmatmul.mubr.bf16.gmra.mxu0 %v866
      %v984 = vpop.f32.mrf.mxu0
      %v985 = vadd.f32 0.0, %v984
      %v986 = vpop.f32.mrf.mxu0
      %v987 = vpop.f32.mrf.mxu0
      %v988 = vadd.f32 0.0, %v987
      %v989 = vpop.f32.mrf.mxu0
      %990 = vmatprep.mubr.bf16.mxu0 0
      %991 = vmatmul.mubr.bf16.gmra.mxu0 %v869
      %v992 = vpop.f32.mrf.mxu0
      %v993 = vadd.f32 0.0, %v992
      %v994 = vpop.f32.mrf.mxu0
      %v995 = vpop.f32.mrf.mxu0
      %v996 = vadd.f32 0.0, %v995
      %v997 = vpop.f32.mrf.mxu0
      %998 = vmatprep.mubr.bf16.mxu0 0
      %999 = vmatmul.mubr.bf16.gmra.mxu0 %v872
      %v1000 = vpop.f32.mrf.mxu0
      %v1001 = vadd.f32 0.0, %v1000
      %v1002 = vpop.f32.mrf.mxu0
      %v1003 = vpop.f32.mrf.mxu0
      %v1004 = vadd.f32 0.0, %v1003
      %v1005 = vpop.f32.mrf.mxu0
      %1006 = vmatprep.mubr.bf16.mxu0 0
      %1007 = vmatmul.mubr.bf16.gmra.mxu0 %v875
      %v1008 = vpop.f32.mrf.mxu0
      %v1009 = vadd.f32 0.0, %v1008
      %v1010 = vpop.f32.mrf.mxu0
      %v1011 = vpop.f32.mrf.mxu0
      %v1012 = vadd.f32 0.0, %v1011
      %v1013 = vpop.f32.mrf.mxu0
      %1014 = vdwg.mxu0
      %v1015 = vpack.c.bf16 %v750, %v746
      %v1016 = vpack.c.bf16 %v752, %v748
      %v1017 = vpack.c.bf16 %v802, %v799
      %v1018 = vpack.c.bf16 %v760, %v756
      %v1019 = vpack.c.bf16 %v762, %v758
      %v1020 = vpack.c.bf16 %v810, %v807
      %v1021 = vpack.c.bf16 %v916, %v912
      %v1022 = vpack.c.bf16 %v918, %v914
      %v1023 = vpack.c.bf16 %v988, %v985
      %v1024 = vpack.c.bf16 %v926, %v922
      %v1025 = vpack.c.bf16 %v928, %v924
      %v1026 = vpack.c.bf16 %v996, %v993
      %v1027 = vpack.c.bf16 %v936, %v932
      %v1028 = vpack.c.bf16 %v938, %v934
      %v1029 = vpack.c.bf16 %v1004, %v1001
      %v1030 = vpack.c.bf16 %v946, %v942
      %v1031 = vpack.c.bf16 %v948, %v944
      %v1032 = vpack.c.bf16 %v1012, %v1009
      %v1033 = vld [vmem:[%s292] sm:$0xf]
      %v1034 = vld [vmem:[%s292 + $0x4] sm:$0xf]
      %v1035 = vld [vmem:[%s292 + $0x8] sm:$0xf]
      %v1036 = vld [vmem:[%s292 + $0xc] sm:$0xf]
      %v1037 = vld [vmem:[%s292 + $0x10] sm:$0xf]
      %v1038 = vld [vmem:[%s292 + $0x14] sm:$0xf]
      %v1039 = vld [vmem:[%s292 + $0x18] sm:$0xf]
      %v1040 = vld [vmem:[%s292 + $0x1c] sm:$0xf]
      %v1041 = vld [vmem:[%s292 + $0x20] sm:$0xf]
      %v1042 = vld [vmem:[%s292 + $0x24] sm:$0xf]
      %v1043 = vld [vmem:[%s292 + $0x28] sm:$0xf]
      %v1044 = vld [vmem:[%s292 + $0x2c] sm:$0xf]
      %v1045 = vld [vmem:[%s292 + $0x30] sm:$0xf]
      %v1046 = vld [vmem:[%s292 + $0x34] sm:$0xf]
      %v1047 = vld [vmem:[%s292 + $0x38] sm:$0xf]
      %v1048 = vld [vmem:[%s292 + $0x3c] sm:$0xf]
      %v1049 = vld [vmem:[%s292 + $0x40] sm:$0xf]
      %v1050 = vld [vmem:[%s292 + $0x44] sm:$0xf]
      %v1051 = vld [vmem:[%s292 + $0x48] sm:$0xf]
      %v1052 = vld [vmem:[%s292 + $0x4c] sm:$0xf]
      %v1053 = vld [vmem:[%s292 + $0x50] sm:$0xf]
      %v1054 = vld [vmem:[%s292 + $0x54] sm:$0xf]
      %v1055 = vld [vmem:[%s292 + $0x58] sm:$0xf]
      %v1056 = vld [vmem:[%s292 + $0x5c] sm:$0xf]
      %v1057 = vld [vmem:[%s292 + $0x60] sm:$0xf]
      %v1058 = vld [vmem:[%s292 + $0x64] sm:$0xf]
      %v1059 = vld [vmem:[%s292 + $0x68] sm:$0xf]
      %v1060 = vld [vmem:[%s292 + $0x6c] sm:$0xf]
      %v1061 = vld [vmem:[%s292 + $0x70] sm:$0xf]
      %v1062 = vld [vmem:[%s292 + $0x74] sm:$0xf]
      %v1063 = vld [vmem:[%s292 + $0x78] sm:$0xf]
      %v1064 = vld [vmem:[%s292 + $0x7c] sm:$0xf]
      %v1065 = vld [vmem:[%s292 + $0x80] sm:$0xf]
      %v1066 = vld [vmem:[%s292 + $0x84] sm:$0xf]
      %v1067 = vld [vmem:[%s292 + $0x88] sm:$0xf]
      %v1068 = vld [vmem:[%s292 + $0x8c] sm:$0xf]
      %v1069 = vld [vmem:[%s292 + $0x90] sm:$0x1]
      %v1107 = vunpack.c.l.b16 %v1033
      %v1108 = vunpack.c.l.b16 %v1034
      %v1109 = vunpack.c.l.b16 %v1035
      %v1110 = vunpack.c.l.b16 %v1036
      %v1111 = vunpack.c.l.b16 %v1037
      %v1112 = vunpack.c.l.b16 %v1038
      %v1113 = vunpack.c.l.b16 %v1039
      %v1114 = vunpack.c.l.b16 %v1040
      %v1115 = vunpack.c.l.b16 %v1041
      %v1116 = vunpack.c.l.b16 %v1042
      %v1117 = vunpack.c.l.b16 %v1043
      %v1118 = vunpack.c.l.b16 %v1044
      %v1119 = vunpack.c.l.b16 %v1045
      %v1120 = vunpack.c.l.b16 %v1046
      %v1121 = vunpack.c.l.b16 %v1047
      %v1122 = vunpack.c.l.b16 %v1048
      %v1123 = vunpack.c.l.b16 %v1049
      %v1124 = vunpack.c.l.b16 %v1050
      %v1125 = vunpack.c.l.b16 %v1051
      %v1126 = vunpack.c.l.b16 %v1052
      %v1127 = vunpack.c.l.b16 %v1053
      %v1128 = vunpack.c.l.b16 %v1054
      %v1129 = vunpack.c.l.b16 %v1055
      %v1130 = vunpack.c.l.b16 %v1056
      %v1131 = vunpack.c.l.b16 %v1057
      %v1132 = vunpack.c.l.b16 %v1058
      %v1133 = vunpack.c.l.b16 %v1059
      %v1134 = vunpack.c.l.b16 %v1060
      %v1135 = vunpack.c.l.b16 %v1061
      %v1136 = vunpack.c.l.b16 %v1062
      %v1137 = vunpack.c.l.b16 %v1063
      %v1138 = vunpack.c.l.b16 %v1064
      %v1139 = vunpack.c.l.b16 %v1065
      %v1140 = vunpack.c.l.b16 %v1066
      %v1141 = vunpack.c.l.b16 %v1067
      %v1142 = vunpack.c.l.b16 %v1068
      %v1143 = vunpack.c.l.b16 %v1069
      %v1144 = vpack.c.b16 %v1108, %v1107
      %v1145 = vpack.c.b16 %v1110, %v1109
      %v1146 = vpack.c.b16 %v1112, %v1111
      %v1147 = vpack.c.b16 %v1114, %v1113
      %v1148 = vpack.c.b16 %v1116, %v1115
      %v1149 = vpack.c.b16 %v1118, %v1117
      %v1150 = vpack.c.b16 %v1120, %v1119
      %v1151 = vpack.c.b16 %v1122, %v1121
      %v1152 = vpack.c.b16 %v1124, %v1123
      %v1153 = vpack.c.b16 %v1126, %v1125
      %v1154 = vpack.c.b16 %v1128, %v1127
      %v1155 = vpack.c.b16 %v1130, %v1129
      %v1156 = vpack.c.b16 %v1132, %v1131
      %v1157 = vpack.c.b16 %v1134, %v1133
      %v1158 = vpack.c.b16 %v1136, %v1135
      %v1159 = vpack.c.b16 %v1138, %v1137
      %v1160 = vpack.c.b16 %v1140, %v1139
      %v1161 = vpack.c.b16 %v1142, %v1141
      %v1162 = vpack.c.b16 %v1143, %v1143
      %v1182 = vsel %vm539, %v1017, 0
      %v1185 = vsel %vm539, %v1020, 0
      %v1188 = vsel %vm539, %v1023, 0
      %v1191 = vsel %vm539, %v1026, 0
      %v1194 = vsel %vm539, %v1029, 0
      %v1197 = vsel %vm539, %v1032, 0
      %v1200 = vand.u32 %v1162, %v545
      %1202 = vmatprep.subr.bf16.mxu0 0
      %1203 = vmatpush1.bf16.msra.mxu0 %v1151
      %1204 = vmatprep.subr.bf16.mxu0 0
      %1205 = vmatpush1.bf16.msra.mxu0 %v1150
      %1206 = vmatprep.subr.bf16.mxu0 0
      %1207 = vmatpush1.bf16.msra.mxu0 %v1149
      %1208 = vmatprep.subr.bf16.mxu0 0
      %1209 = vmatpush1.bf16.msra.mxu0 %v1148
      %1210 = vmatprep.subr.bf16.mxu0 0
      %1211 = vmatpush1.bf16.msra.mxu0 %v1147
      %1212 = vmatprep.subr.bf16.mxu0 0
      %1213 = vmatpush1.bf16.msra.mxu0 %v1146
      %1214 = vmatprep.subr.bf16.mxu0 0
      %1215 = vmatpush1.bf16.msra.mxu0 %v1145
      %1216 = vmatprep.subr.bf16.mxu0 0
      %1217 = vmatpush1.bf16.msra.mxu0 %v1144
      %1218 = vmatprep.subr.bf16.mxu0 0
      %1219 = vmatpush2.bf16.msra.mxu0 %v1159
      %1220 = vmatprep.subr.bf16.mxu0 0
      %1221 = vmatpush2.bf16.msra.mxu0 %v1158
      %1222 = vmatprep.subr.bf16.mxu0 0
      %1223 = vmatpush2.bf16.msra.mxu0 %v1157
      %1224 = vmatprep.subr.bf16.mxu0 0
      %1225 = vmatpush2.bf16.msra.mxu0 %v1156
      %1226 = vmatprep.subr.bf16.mxu0 0
      %1227 = vmatpush2.bf16.msra.mxu0 %v1155
      %1228 = vmatprep.subr.bf16.mxu0 0
      %1229 = vmatpush2.bf16.msra.mxu0 %v1154
      %1230 = vmatprep.subr.bf16.mxu0 0
      %1231 = vmatpush2.bf16.msra.mxu0 %v1153
      %1232 = vmatprep.subr.bf16.mxu0 0
      %1233 = vmatpush2.bf16.msra.mxu0 %v1152
      %1234 = vmatprep.mubr.bf16.mxu0 %v1016
      %1235 = vmatmul.mubr.bf16.gmra.mxu0 %v1015
      %v1236 = vpop.f32.mrf.mxu0
      %v1237 = vadd.f32 0.0, %v1236
      %v1238 = vpop.f32.mrf.mxu0
      %v1239 = vpop.f32.mrf.mxu0
      %v1240 = vadd.f32 0.0, %v1239
      %v1241 = vpop.f32.mrf.mxu0
      %1242 = vmatprep.mubr.bf16.mxu0 %v1019
      %1243 = vmatmul.mubr.bf16.gmra.mxu0 %v1018
      %v1244 = vpop.f32.mrf.mxu0
      %v1245 = vadd.f32 0.0, %v1244
      %v1246 = vpop.f32.mrf.mxu0
      %v1247 = vpop.f32.mrf.mxu0
      %v1248 = vadd.f32 0.0, %v1247
      %v1249 = vpop.f32.mrf.mxu0
      %1250 = vmatprep.mubr.bf16.mxu0 %v1022
      %1251 = vmatmul.mubr.bf16.gmra.mxu0 %v1021
      %v1252 = vpop.f32.mrf.mxu0
      %v1253 = vadd.f32 0.0, %v1252
      %v1254 = vpop.f32.mrf.mxu0
      %v1255 = vpop.f32.mrf.mxu0
      %v1256 = vadd.f32 0.0, %v1255
      %v1257 = vpop.f32.mrf.mxu0
      %1258 = vmatprep.mubr.bf16.mxu0 %v1025
      %1259 = vmatmul.mubr.bf16.gmra.mxu0 %v1024
      %v1260 = vpop.f32.mrf.mxu0
      %v1261 = vadd.f32 0.0, %v1260
      %v1262 = vpop.f32.mrf.mxu0
      %v1263 = vpop.f32.mrf.mxu0
      %v1264 = vadd.f32 0.0, %v1263
      %v1265 = vpop.f32.mrf.mxu0
      %1266 = vmatprep.mubr.bf16.mxu0 %v1028
      %1267 = vmatmul.mubr.bf16.gmra.mxu0 %v1027
      %v1268 = vpop.f32.mrf.mxu0
      %v1269 = vadd.f32 0.0, %v1268
      %v1270 = vpop.f32.mrf.mxu0
      %v1271 = vpop.f32.mrf.mxu0
      %v1272 = vadd.f32 0.0, %v1271
      %v1273 = vpop.f32.mrf.mxu0
      %1274 = vmatprep.mubr.bf16.mxu0 %v1031
      %1275 = vmatmul.mubr.bf16.gmra.mxu0 %v1030
      %v1276 = vpop.f32.mrf.mxu0
      %v1277 = vadd.f32 0.0, %v1276
      %v1278 = vpop.f32.mrf.mxu0
      %v1279 = vpop.f32.mrf.mxu0
      %v1280 = vadd.f32 0.0, %v1279
      %v1281 = vpop.f32.mrf.mxu0
      %1282 = vdwg.mxu0
      %1283 = vmatprep.subr.bf16.mxu0 0
      %1284 = vmatpush1.bf16.msra.mxu0 0
      %1285 = vmatprep.subr.bf16.mxu0 0
      %1286 = vmatpush1.bf16.msra.mxu0 0
      %1287 = vmatprep.subr.bf16.mxu0 0
      %1288 = vmatpush1.bf16.msra.mxu0 0
      %1289 = vmatprep.subr.bf16.mxu0 0
      %1290 = vmatpush1.bf16.msra.mxu0 0
      %1291 = vmatprep.subr.bf16.mxu0 0
      %1292 = vmatpush1.bf16.msra.mxu0 0
      %1293 = vmatprep.subr.bf16.mxu0 0
      %1294 = vmatpush1.bf16.msra.mxu0 %v1200
      %1295 = vmatprep.subr.bf16.mxu0 0
      %1296 = vmatpush1.bf16.msra.mxu0 %v1161
      %1297 = vmatprep.subr.bf16.mxu0 0
      %1298 = vmatpush1.bf16.msra.mxu0 %v1160
      %1299 = vmatprep.subr.bf16.mxu0 0
      %1300 = vmatpush2.bf16.msra.mxu0 0
      %1301 = vmatprep.subr.bf16.mxu0 0
      %1302 = vmatpush2.bf16.msra.mxu0 0
      %1303 = vmatprep.subr.bf16.mxu0 0
      %1304 = vmatpush2.bf16.msra.mxu0 0
      %1305 = vmatprep.subr.bf16.mxu0 0
      %1306 = vmatpush2.bf16.msra.mxu0 0
      %1307 = vmatprep.subr.bf16.mxu0 0
      %1308 = vmatpush2.bf16.msra.mxu0 0
      %1309 = vmatprep.subr.bf16.mxu0 0
      %1310 = vmatpush2.bf16.msra.mxu0 0
      %1311 = vmatprep.subr.bf16.mxu0 0
      %1312 = vmatpush2.bf16.msra.mxu0 0
      %1313 = vmatprep.subr.bf16.mxu0 0
      %1314 = vmatpush2.bf16.msra.mxu0 0
      %1315 = vmatprep.mubr.bf16.mxu0 0
      %1316 = vmatmul.mubr.bf16.gmra.mxu0 %v1182
      %v1317 = vpop.f32.mrf.mxu0
      %v1318 = vadd.f32 %v1237, %v1317
      %v1319 = vpop.f32.mrf.mxu0
      %v1320 = vpop.f32.mrf.mxu0
      %v1321 = vadd.f32 %v1240, %v1320
      %v1322 = vpop.f32.mrf.mxu0
      %1323 = vmatprep.mubr.bf16.mxu0 0
      %1324 = vmatmul.mubr.bf16.gmra.mxu0 %v1185
      %v1325 = vpop.f32.mrf.mxu0
      %v1326 = vadd.f32 %v1245, %v1325
      %v1327 = vpop.f32.mrf.mxu0
      %v1328 = vpop.f32.mrf.mxu0
      %v1329 = vadd.f32 %v1248, %v1328
      %v1330 = vpop.f32.mrf.mxu0
      %1331 = vmatprep.mubr.bf16.mxu0 0
      %1332 = vmatmul.mubr.bf16.gmra.mxu0 %v1188
      %v1333 = vpop.f32.mrf.mxu0
      %v1334 = vadd.f32 %v1253, %v1333
      %v1335 = vpop.f32.mrf.mxu0
      %v1336 = vpop.f32.mrf.mxu0
      %v1337 = vadd.f32 %v1256, %v1336
      %v1338 = vpop.f32.mrf.mxu0
      %1339 = vmatprep.mubr.bf16.mxu0 0
      %1340 = vmatmul.mubr.bf16.gmra.mxu0 %v1191
      %v1341 = vpop.f32.mrf.mxu0
      %v1342 = vadd.f32 %v1261, %v1341
      %v1343 = vpop.f32.mrf.mxu0
      %v1344 = vpop.f32.mrf.mxu0
      %v1345 = vadd.f32 %v1264, %v1344
      %v1346 = vpop.f32.mrf.mxu0
      %1347 = vmatprep.mubr.bf16.mxu0 0
      %1348 = vmatmul.mubr.bf16.gmra.mxu0 %v1194
      %v1349 = vpop.f32.mrf.mxu0
      %v1350 = vadd.f32 %v1269, %v1349
      %v1351 = vpop.f32.mrf.mxu0
      %v1352 = vpop.f32.mrf.mxu0
      %v1353 = vadd.f32 %v1272, %v1352
      %v1354 = vpop.f32.mrf.mxu0
      %1355 = vmatprep.mubr.bf16.mxu0 0
      %1356 = vmatmul.mubr.bf16.gmra.mxu0 %v1197
      %v1357 = vpop.f32.mrf.mxu0
      %v1358 = vadd.f32 %v1277, %v1357
      %v1359 = vpop.f32.mrf.mxu0
      %v1360 = vpop.f32.mrf.mxu0
      %v1361 = vadd.f32 %v1280, %v1360
      %v1362 = vpop.f32.mrf.mxu0
      %1363 = vdwg.mxu0
      %v1364 = vadd.f32 %v1318, 0.0
      %v1366 = vrot.slane %v1318, 1
      %1367 = vrot.lane.b32.xlu0 %v1366, 127
      %v1368 = vpop.permute.xlu0 %1367
      %v1370 = vadd.f32 %v1364, %v1368
      %v1371 = vrot.slane %v1318, 2
      %1372 = vrot.lane.b32.xlu0 %v1371, 126
      %v1373 = vpop.permute.xlu0 %1372
      %v1375 = vadd.f32 %v1370, %v1373
      %v1376 = vrot.slane %v1318, 3
      %1377 = vrot.lane.b32.xlu0 %v1376, 125
      %v1378 = vpop.permute.xlu0 %1377
      %v1380 = vadd.f32 %v1375, %v1378
      %v1381 = vrot.slane %v1318, 4
      %1382 = vrot.lane.b32.xlu0 %v1381, 118
      %v1383 = vpop.permute.xlu0 %1382
      %v1385 = vadd.f32 %v1380, %v1383
      %v1386 = vrot.slane %v1318, 5
      %1387 = vrot.lane.b32.xlu0 %v1386, 117
      %v1388 = vpop.permute.xlu0 %1387
      %v1390 = vadd.f32 %v1385, %v1388
      %v1391 = vrot.slane %v1318, 6
      %1392 = vrot.lane.b32.xlu0 %v1391, 116
      %v1393 = vpop.permute.xlu0 %1392
      %v1395 = vadd.f32 %v1390, %v1393
      %v1396 = vrot.slane %v1318, 7
      %1397 = vrot.lane.b32.xlu0 %v1396, 115
      %v1398 = vpop.permute.xlu0 %1397
      %v1400 = vadd.f32 %v1395, %v1398
      %1402 = vrot.lane.b32.xlu0 %v1321, 108
      %v1403 = vpop.permute.xlu0 %1402
      %v1405 = vadd.f32 %v1400, %v1403
      %v1406 = vrot.slane %v1321, 1
      %1407 = vrot.lane.b32.xlu0 %v1406, 107
      %v1408 = vpop.permute.xlu0 %1407
      %v1410 = vadd.f32 %v1405, %v1408
      %v1411 = vrot.slane %v1321, 2
      %1412 = vrot.lane.b32.xlu0 %v1411, 106
      %v1413 = vpop.permute.xlu0 %1412
      %v1415 = vadd.f32 %v1410, %v1413
      %v1416 = vrot.slane %v1321, 3
      %1417 = vrot.lane.b32.xlu0 %v1416, 105
      %v1418 = vpop.permute.xlu0 %1417
      %v1420 = vadd.f32 %v1415, %v1418
      %v1421 = vrot.slane %v1321, 4
      %1422 = vrot.lane.b32.xlu0 %v1421, 98
      %v1423 = vpop.permute.xlu0 %1422
      %v1425 = vadd.f32 %v1420, %v1423
      %v1426 = vrot.slane %v1321, 5
      %1427 = vrot.lane.b32.xlu0 %v1426, 97
      %v1428 = vpop.permute.xlu0 %1427
      %v1430 = vadd.f32 %v1425, %v1428
      %v1431 = vrot.slane %v1321, 6
      %1432 = vrot.lane.b32.xlu0 %v1431, 96
      %v1433 = vpop.permute.xlu0 %1432
      %v1435 = vadd.f32 %v1430, %v1433
      %v1436 = vrot.slane %v1321, 7
      %1437 = vrot.lane.b32.xlu0 %v1436, 95
      %v1438 = vpop.permute.xlu0 %1437
      %v1440 = vadd.f32 %v1435, %v1438
      %v1441 = vadd.f32 %v1326, 0.0
      %v1443 = vrot.slane %v1326, 1
      %1444 = vrot.lane.b32.xlu0 %v1443, 127
      %v1445 = vpop.permute.xlu0 %1444
      %v1447 = vadd.f32 %v1441, %v1445
      %v1448 = vrot.slane %v1326, 2
      %1449 = vrot.lane.b32.xlu0 %v1448, 126
      %v1450 = vpop.permute.xlu0 %1449
      %v1452 = vadd.f32 %v1447, %v1450
      %v1453 = vrot.slane %v1326, 3
      %1454 = vrot.lane.b32.xlu0 %v1453, 125
      %v1455 = vpop.permute.xlu0 %1454
      %v1457 = vadd.f32 %v1452, %v1455
      %v1458 = vrot.slane %v1326, 4
      %1459 = vrot.lane.b32.xlu0 %v1458, 118
      %v1460 = vpop.permute.xlu0 %1459
      %v1462 = vadd.f32 %v1457, %v1460
      %v1463 = vrot.slane %v1326, 5
      %1464 = vrot.lane.b32.xlu0 %v1463, 117
      %v1465 = vpop.permute.xlu0 %1464
      %v1467 = vadd.f32 %v1462, %v1465
      %v1468 = vrot.slane %v1326, 6
      %1469 = vrot.lane.b32.xlu0 %v1468, 116
      %v1470 = vpop.permute.xlu0 %1469
      %v1472 = vadd.f32 %v1467, %v1470
      %v1473 = vrot.slane %v1326, 7
      %1474 = vrot.lane.b32.xlu0 %v1473, 115
      %v1475 = vpop.permute.xlu0 %1474
      %v1477 = vadd.f32 %v1472, %v1475
      %1479 = vrot.lane.b32.xlu0 %v1329, 108
      %v1480 = vpop.permute.xlu0 %1479
      %v1482 = vadd.f32 %v1477, %v1480
      %v1483 = vrot.slane %v1329, 1
      %1484 = vrot.lane.b32.xlu0 %v1483, 107
      %v1485 = vpop.permute.xlu0 %1484
      %v1487 = vadd.f32 %v1482, %v1485
      %v1488 = vrot.slane %v1329, 2
      %1489 = vrot.lane.b32.xlu0 %v1488, 106
      %v1490 = vpop.permute.xlu0 %1489
      %v1492 = vadd.f32 %v1487, %v1490
      %v1493 = vrot.slane %v1329, 3
      %1494 = vrot.lane.b32.xlu0 %v1493, 105
      %v1495 = vpop.permute.xlu0 %1494
      %v1497 = vadd.f32 %v1492, %v1495
      %v1498 = vrot.slane %v1329, 4
      %1499 = vrot.lane.b32.xlu0 %v1498, 98
      %v1500 = vpop.permute.xlu0 %1499
      %v1502 = vadd.f32 %v1497, %v1500
      %v1503 = vrot.slane %v1329, 5
      %1504 = vrot.lane.b32.xlu0 %v1503, 97
      %v1505 = vpop.permute.xlu0 %1504
      %v1507 = vadd.f32 %v1502, %v1505
      %v1508 = vrot.slane %v1329, 6
      %1509 = vrot.lane.b32.xlu0 %v1508, 96
      %v1510 = vpop.permute.xlu0 %1509
      %v1512 = vadd.f32 %v1507, %v1510
      %v1513 = vrot.slane %v1329, 7
      %1514 = vrot.lane.b32.xlu0 %v1513, 95
      %v1515 = vpop.permute.xlu0 %1514
      %v1517 = vadd.f32 %v1512, %v1515
      %v1518 = vadd.f32 %v1334, 0.0
      %v1520 = vrot.slane %v1334, 1
      %1521 = vrot.lane.b32.xlu0 %v1520, 127
      %v1522 = vpop.permute.xlu0 %1521
      %v1524 = vadd.f32 %v1518, %v1522
      %v1525 = vrot.slane %v1334, 2
      %1526 = vrot.lane.b32.xlu0 %v1525, 126
      %v1527 = vpop.permute.xlu0 %1526
      %v1529 = vadd.f32 %v1524, %v1527
      %v1530 = vrot.slane %v1334, 3
      %1531 = vrot.lane.b32.xlu0 %v1530, 125
      %v1532 = vpop.permute.xlu0 %1531
      %v1534 = vadd.f32 %v1529, %v1532
      %v1535 = vrot.slane %v1334, 4
      %1536 = vrot.lane.b32.xlu0 %v1535, 118
      %v1537 = vpop.permute.xlu0 %1536
      %v1539 = vadd.f32 %v1534, %v1537
      %v1540 = vrot.slane %v1334, 5
      %1541 = vrot.lane.b32.xlu0 %v1540, 117
      %v1542 = vpop.permute.xlu0 %1541
      %v1544 = vadd.f32 %v1539, %v1542
      %v1545 = vrot.slane %v1334, 6
      %1546 = vrot.lane.b32.xlu0 %v1545, 116
      %v1547 = vpop.permute.xlu0 %1546
      %v1549 = vadd.f32 %v1544, %v1547
      %v1550 = vrot.slane %v1334, 7
      %1551 = vrot.lane.b32.xlu0 %v1550, 115
      %v1552 = vpop.permute.xlu0 %1551
      %v1554 = vadd.f32 %v1549, %v1552
      %1556 = vrot.lane.b32.xlu0 %v1337, 108
      %v1557 = vpop.permute.xlu0 %1556
      %v1559 = vadd.f32 %v1554, %v1557
      %v1560 = vrot.slane %v1337, 1
      %1561 = vrot.lane.b32.xlu0 %v1560, 107
      %v1562 = vpop.permute.xlu0 %1561
      %v1564 = vadd.f32 %v1559, %v1562
      %v1565 = vrot.slane %v1337, 2
      %1566 = vrot.lane.b32.xlu0 %v1565, 106
      %v1567 = vpop.permute.xlu0 %1566
      %v1569 = vadd.f32 %v1564, %v1567
      %v1570 = vrot.slane %v1337, 3
      %1571 = vrot.lane.b32.xlu0 %v1570, 105
      %v1572 = vpop.permute.xlu0 %1571
      %v1574 = vadd.f32 %v1569, %v1572
      %v1575 = vrot.slane %v1337, 4
      %1576 = vrot.lane.b32.xlu0 %v1575, 98
      %v1577 = vpop.permute.xlu0 %1576
      %v1579 = vadd.f32 %v1574, %v1577
      %v1580 = vrot.slane %v1337, 5
      %1581 = vrot.lane.b32.xlu0 %v1580, 97
      %v1582 = vpop.permute.xlu0 %1581
      %v1584 = vadd.f32 %v1579, %v1582
      %v1585 = vrot.slane %v1337, 6
      %1586 = vrot.lane.b32.xlu0 %v1585, 96
      %v1587 = vpop.permute.xlu0 %1586
      %v1589 = vadd.f32 %v1584, %v1587
      %v1590 = vrot.slane %v1337, 7
      %1591 = vrot.lane.b32.xlu0 %v1590, 95
      %v1592 = vpop.permute.xlu0 %1591
      %v1594 = vadd.f32 %v1589, %v1592
      %v1595 = vadd.f32 %v1342, 0.0
      %v1597 = vrot.slane %v1342, 1
      %1598 = vrot.lane.b32.xlu0 %v1597, 127
      %v1599 = vpop.permute.xlu0 %1598
      %v1601 = vadd.f32 %v1595, %v1599
      %v1602 = vrot.slane %v1342, 2
      %1603 = vrot.lane.b32.xlu0 %v1602, 126
      %v1604 = vpop.permute.xlu0 %1603
      %v1606 = vadd.f32 %v1601, %v1604
      %v1607 = vrot.slane %v1342, 3
      %1608 = vrot.lane.b32.xlu0 %v1607, 125
      %v1609 = vpop.permute.xlu0 %1608
      %v1611 = vadd.f32 %v1606, %v1609
      %v1612 = vrot.slane %v1342, 4
      %1613 = vrot.lane.b32.xlu0 %v1612, 118
      %v1614 = vpop.permute.xlu0 %1613
      %v1616 = vadd.f32 %v1611, %v1614
      %v1617 = vrot.slane %v1342, 5
      %1618 = vrot.lane.b32.xlu0 %v1617, 117
      %v1619 = vpop.permute.xlu0 %1618
      %v1621 = vadd.f32 %v1616, %v1619
      %v1622 = vrot.slane %v1342, 6
      %1623 = vrot.lane.b32.xlu0 %v1622, 116
      %v1624 = vpop.permute.xlu0 %1623
      %v1626 = vadd.f32 %v1621, %v1624
      %v1627 = vrot.slane %v1342, 7
      %1628 = vrot.lane.b32.xlu0 %v1627, 115
      %v1629 = vpop.permute.xlu0 %1628
      %v1631 = vadd.f32 %v1626, %v1629
      %1633 = vrot.lane.b32.xlu0 %v1345, 108
      %v1634 = vpop.permute.xlu0 %1633
      %v1636 = vadd.f32 %v1631, %v1634
      %v1637 = vrot.slane %v1345, 1
      %1638 = vrot.lane.b32.xlu0 %v1637, 107
      %v1639 = vpop.permute.xlu0 %1638
      %v1641 = vadd.f32 %v1636, %v1639
      %v1642 = vrot.slane %v1345, 2
      %1643 = vrot.lane.b32.xlu0 %v1642, 106
      %v1644 = vpop.permute.xlu0 %1643
      %v1646 = vadd.f32 %v1641, %v1644
      %v1647 = vrot.slane %v1345, 3
      %1648 = vrot.lane.b32.xlu0 %v1647, 105
      %v1649 = vpop.permute.xlu0 %1648
      %v1651 = vadd.f32 %v1646, %v1649
      %v1652 = vrot.slane %v1345, 4
      %1653 = vrot.lane.b32.xlu0 %v1652, 98
      %v1654 = vpop.permute.xlu0 %1653
      %v1656 = vadd.f32 %v1651, %v1654
      %v1657 = vrot.slane %v1345, 5
      %1658 = vrot.lane.b32.xlu0 %v1657, 97
      %v1659 = vpop.permute.xlu0 %1658
      %v1661 = vadd.f32 %v1656, %v1659
      %v1662 = vrot.slane %v1345, 6
      %1663 = vrot.lane.b32.xlu0 %v1662, 96
      %v1664 = vpop.permute.xlu0 %1663
      %v1666 = vadd.f32 %v1661, %v1664
      %v1667 = vrot.slane %v1345, 7
      %1668 = vrot.lane.b32.xlu0 %v1667, 95
      %v1669 = vpop.permute.xlu0 %1668
      %v1671 = vadd.f32 %v1666, %v1669
      %v1672 = vadd.f32 %v1350, 0.0
      %v1674 = vrot.slane %v1350, 1
      %1675 = vrot.lane.b32.xlu0 %v1674, 127
      %v1676 = vpop.permute.xlu0 %1675
      %v1678 = vadd.f32 %v1672, %v1676
      %v1679 = vrot.slane %v1350, 2
      %1680 = vrot.lane.b32.xlu0 %v1679, 126
      %v1681 = vpop.permute.xlu0 %1680
      %v1683 = vadd.f32 %v1678, %v1681
      %v1684 = vrot.slane %v1350, 3
      %1685 = vrot.lane.b32.xlu0 %v1684, 125
      %v1686 = vpop.permute.xlu0 %1685
      %v1688 = vadd.f32 %v1683, %v1686
      %v1689 = vrot.slane %v1350, 4
      %1690 = vrot.lane.b32.xlu0 %v1689, 118
      %v1691 = vpop.permute.xlu0 %1690
      %v1693 = vadd.f32 %v1688, %v1691
      %v1694 = vrot.slane %v1350, 5
      %1695 = vrot.lane.b32.xlu0 %v1694, 117
      %v1696 = vpop.permute.xlu0 %1695
      %v1698 = vadd.f32 %v1693, %v1696
      %v1699 = vrot.slane %v1350, 6
      %1700 = vrot.lane.b32.xlu0 %v1699, 116
      %v1701 = vpop.permute.xlu0 %1700
      %v1703 = vadd.f32 %v1698, %v1701
      %v1704 = vrot.slane %v1350, 7
      %1705 = vrot.lane.b32.xlu0 %v1704, 115
      %v1706 = vpop.permute.xlu0 %1705
      %v1708 = vadd.f32 %v1703, %v1706
      %1710 = vrot.lane.b32.xlu0 %v1353, 108
      %v1711 = vpop.permute.xlu0 %1710
      %v1713 = vadd.f32 %v1708, %v1711
      %v1714 = vrot.slane %v1353, 1
      %1715 = vrot.lane.b32.xlu0 %v1714, 107
      %v1716 = vpop.permute.xlu0 %1715
      %v1718 = vadd.f32 %v1713, %v1716
      %v1719 = vrot.slane %v1353, 2
      %1720 = vrot.lane.b32.xlu0 %v1719, 106
      %v1721 = vpop.permute.xlu0 %1720
      %v1723 = vadd.f32 %v1718, %v1721
      %v1724 = vrot.slane %v1353, 3
      %1725 = vrot.lane.b32.xlu0 %v1724, 105
      %v1726 = vpop.permute.xlu0 %1725
      %v1728 = vadd.f32 %v1723, %v1726
      %v1729 = vrot.slane %v1353, 4
      %1730 = vrot.lane.b32.xlu0 %v1729, 98
      %v1731 = vpop.permute.xlu0 %1730
      %v1733 = vadd.f32 %v1728, %v1731
      %v1734 = vrot.slane %v1353, 5
      %1735 = vrot.lane.b32.xlu0 %v1734, 97
      %v1736 = vpop.permute.xlu0 %1735
      %v1738 = vadd.f32 %v1733, %v1736
      %v1739 = vrot.slane %v1353, 6
      %1740 = vrot.lane.b32.xlu0 %v1739, 96
      %v1741 = vpop.permute.xlu0 %1740
      %v1743 = vadd.f32 %v1738, %v1741
      %v1744 = vrot.slane %v1353, 7
      %1745 = vrot.lane.b32.xlu0 %v1744, 95
      %v1746 = vpop.permute.xlu0 %1745
      %v1748 = vadd.f32 %v1743, %v1746
      %v1749 = vadd.f32 %v1358, 0.0
      %v1751 = vrot.slane %v1358, 1
      %1752 = vrot.lane.b32.xlu0 %v1751, 127
      %v1753 = vpop.permute.xlu0 %1752
      %v1755 = vadd.f32 %v1749, %v1753
      %v1756 = vrot.slane %v1358, 2
      %1757 = vrot.lane.b32.xlu0 %v1756, 126
      %v1758 = vpop.permute.xlu0 %1757
      %v1760 = vadd.f32 %v1755, %v1758
      %v1761 = vrot.slane %v1358, 3
      %1762 = vrot.lane.b32.xlu0 %v1761, 125
      %v1763 = vpop.permute.xlu0 %1762
      %v1765 = vadd.f32 %v1760, %v1763
      %v1766 = vrot.slane %v1358, 4
      %1767 = vrot.lane.b32.xlu0 %v1766, 118
      %v1768 = vpop.permute.xlu0 %1767
      %v1770 = vadd.f32 %v1765, %v1768
      %v1771 = vrot.slane %v1358, 5
      %1772 = vrot.lane.b32.xlu0 %v1771, 117
      %v1773 = vpop.permute.xlu0 %1772
      %v1775 = vadd.f32 %v1770, %v1773
      %v1776 = vrot.slane %v1358, 6
      %1777 = vrot.lane.b32.xlu0 %v1776, 116
      %v1778 = vpop.permute.xlu0 %1777
      %v1780 = vadd.f32 %v1775, %v1778
      %v1781 = vrot.slane %v1358, 7
      %1782 = vrot.lane.b32.xlu0 %v1781, 115
      %v1783 = vpop.permute.xlu0 %1782
      %v1785 = vadd.f32 %v1780, %v1783
      %1787 = vrot.lane.b32.xlu0 %v1361, 108
      %v1788 = vpop.permute.xlu0 %1787
      %v1790 = vadd.f32 %v1785, %v1788
      %v1791 = vrot.slane %v1361, 1
      %1792 = vrot.lane.b32.xlu0 %v1791, 107
      %v1793 = vpop.permute.xlu0 %1792
      %v1795 = vadd.f32 %v1790, %v1793
      %v1796 = vrot.slane %v1361, 2
      %1797 = vrot.lane.b32.xlu0 %v1796, 106
      %v1798 = vpop.permute.xlu0 %1797
      %v1800 = vadd.f32 %v1795, %v1798
      %v1801 = vrot.slane %v1361, 3
      %1802 = vrot.lane.b32.xlu0 %v1801, 105
      %v1803 = vpop.permute.xlu0 %1802
      %v1805 = vadd.f32 %v1800, %v1803
      %v1806 = vrot.slane %v1361, 4
      %1807 = vrot.lane.b32.xlu0 %v1806, 98
      %v1808 = vpop.permute.xlu0 %1807
      %v1810 = vadd.f32 %v1805, %v1808
      %v1811 = vrot.slane %v1361, 5
      %1812 = vrot.lane.b32.xlu0 %v1811, 97
      %v1813 = vpop.permute.xlu0 %1812
      %v1815 = vadd.f32 %v1810, %v1813
      %v1816 = vrot.slane %v1361, 6
      %1817 = vrot.lane.b32.xlu0 %v1816, 96
      %v1818 = vpop.permute.xlu0 %1817
      %v1820 = vadd.f32 %v1815, %v1818
      %v1821 = vrot.slane %v1361, 7
      %1822 = vrot.lane.b32.xlu0 %v1821, 95
      %v1823 = vpop.permute.xlu0 %1822
      %v1825 = vadd.f32 %v1820, %v1823
      %v1827 = vrot.slane %v1517, 7
      %v1829 = vsel %vm543, %v1440, %v1827
      %v1831 = vrot.slane %v1671, 7
      %v1834 = vrot.slane %v1748, 6
      %v1837 = vrot.slane %v1825, 5
      %v1839 = vsel %vm543, %v1594, %v1831
      %vm1840 = vcmask 1041408
      %v1841 = vsel %vm1840, %v1839, %v1834
      %vm1842 = vcmask 1042432
      %v1843 = vsel %vm1842, %v1841, %v1837
      %v1844 = vld [vmem:[%s5] sm:$0xf]
      %v1845 = vld [vmem:[%s6] sm:$0xf]
      %1847 = vset.pattern.permute.xlu0 0
      %1848 = vperm.xlu0 %1847, %v1845
      %v1849 = vpop.permute.xlu0 %1848
      %vm1851 = vcmask 31744
      %v1853 = vsel %vm1851, %v1844, 0
      %vm1855 = vcmask 1043456
      %v1857 = vsel %vm1855, %v1843, 0
      %1859 = vmatprep.subr.mxu0 0.0
      %1860 = vmatpush1.msra.mxu0 0.0
      %1861 = vmatprep.subr.mxu0 0.0
      %1862 = vmatpush1.msra.mxu0 0.0
      %1863 = vmatprep.subr.mxu0 0.0
      %1864 = vmatpush1.msra.mxu0 0.0
      %1865 = vmatprep.subr.mxu0 0.0
      %1866 = vmatpush1.msra.mxu0 0.0
      %1867 = vmatprep.subr.mxu0 0.0
      %1868 = vmatpush1.msra.mxu0 0.0
      %1869 = vmatprep.subr.mxu0 0.0
      %1870 = vmatpush1.msra.mxu0 0.0
      %1871 = vmatprep.subr.mxu0 0.0
      %1872 = vmatpush1.msra.mxu0 0.0
      %1873 = vmatprep.subr.mxu0 0.0
      %1874 = vmatpush1.msra.mxu0 0.0
      %1875 = vmatprep.subr.mxu0 0.0
      %1876 = vmatpush1.msra.mxu0 0.0
      %1877 = vmatprep.subr.mxu0 0.0
      %1878 = vmatpush1.msra.mxu0 0.0
      %1879 = vmatprep.subr.mxu0 0.0
      %1880 = vmatpush1.msra.mxu0 0.0
      %1881 = vmatprep.subr.mxu0 0.0
      %1882 = vmatpush1.msra.mxu0 0.0
      %1883 = vmatprep.subr.mxu0 0.0
      %1884 = vmatpush1.msra.mxu0 0.0
      %1885 = vmatprep.subr.mxu0 0.0
      %1886 = vmatpush1.msra.mxu0 0.0
      %1887 = vmatprep.subr.mxu0 0.0
      %1888 = vmatpush1.msra.mxu0 0.0
      %1889 = vmatprep.subr.mxu0 0.0
      %1890 = vmatpush1.msra.mxu0 %v1857
      %1891 = vmatprep.subr.mxu0 0.0
      %1892 = vmatpush2.msra.mxu0 0.0
      %1893 = vmatprep.subr.mxu0 0.0
      %1894 = vmatpush2.msra.mxu0 0.0
      %1895 = vmatprep.subr.mxu0 0.0
      %1896 = vmatpush2.msra.mxu0 0.0
      %1897 = vmatprep.subr.mxu0 0.0
      %1898 = vmatpush2.msra.mxu0 0.0
      %1899 = vmatprep.subr.mxu0 0.0
      %1900 = vmatpush2.msra.mxu0 0.0
      %1901 = vmatprep.subr.mxu0 0.0
      %1902 = vmatpush2.msra.mxu0 0.0
      %1903 = vmatprep.subr.mxu0 0.0
      %1904 = vmatpush2.msra.mxu0 0.0
      %1905 = vmatprep.subr.mxu0 0.0
      %1906 = vmatpush2.msra.mxu0 0.0
      %1907 = vmatprep.subr.mxu0 0.0
      %1908 = vmatpush2.msra.mxu0 0.0
      %1909 = vmatprep.subr.mxu0 0.0
      %1910 = vmatpush2.msra.mxu0 0.0
      %1911 = vmatprep.subr.mxu0 0.0
      %1912 = vmatpush2.msra.mxu0 0.0
      %1913 = vmatprep.subr.mxu0 0.0
      %1914 = vmatpush2.msra.mxu0 0.0
      %1915 = vmatprep.subr.mxu0 0.0
      %1916 = vmatpush2.msra.mxu0 0.0
      %1917 = vmatprep.subr.mxu0 0.0
      %1918 = vmatpush2.msra.mxu0 0.0
      %1919 = vmatprep.subr.mxu0 0.0
      %1920 = vmatpush2.msra.mxu0 0.0
      %1921 = vmatprep.subr.mxu0 0.0
      %1922 = vmatpush2.msra.mxu0 0.0
      %1923 = vmatprep.mubr.f32.mxu0 0.0
      %1924 = vmatmul.mubr.f32.gmra.mxu0 %v1853
      %v1925 = vpop.f32.mrf.mxu0
      %v1926 = vadd.f32 %v1849, %v1925
      %v1927 = vpop.f32.mrf.mxu0
      %1928 = vdwg.mxu0
      %v1930 = vrot.slane %v1926, 6
      %v1932 = vsel %vm1840, %v1829, %v1930
      %vm1933 = vcmask 545792
      %1934 = vst.msk [vmem:[%s296] sm:$0x3f] %vm1933, %v1932
      %p1935 = scmp.lt.s32.totalorder %s18, 1
      %s1936 = scalar_select %p1935, %s18, 1
      %s1937 = smul.addr %s1936, 8
      %s1938 = scalar_lea.vmem %s7, %s1937
      // Predicated region
      $region49: #{upchannel_ban_forward.1} parent=47 // pred_check
        %p1939 = pneg %p193
      $region50: #{upchannel_ban_forward.1} parent=47 // pred_check_branch
        %1941 = sbr.rel (%p1939) target = $region52
      $region51: #{upchannel_ban_forward.1} parent=47 // pred_region
        _
      $region52: #{upchannel_ban_forward.1} parent=47 // pred_fallthru
        _
    $region48: #{upchannel_ban_forward.1} parent=5 // pred_fallthru
      _
    %p1942 = scmp.le.s32.totalorder 2, %s13
    // Predicated region
    $region53: #{upchannel_ban_forward.1} parent=5 // pred_check
      %p1943 = pneg %p1942
    $region54: #{upchannel_ban_forward.1} parent=5 // pred_check_branch
      %1945 = sbr.rel (%p1943) target = $region56
    $region55: #{upchannel_ban_forward.1} parent=5 // pred_region
      %s1946 = ssub.s32 %s13, 2
      // Predicated region
      $region57: #{upchannel_ban_forward.1} parent=55 // pred_check
        %p1947 = pneg %p199
      $region58: #{upchannel_ban_forward.1} parent=55 // pred_check_branch
        %1949 = sbr.rel (%p1947) target = $region60
      $region59: #{upchannel_ban_forward.1} parent=55 // pred_region
        %p1950 = scmp.lt.s32.totalorder %s19, 1
        %s1951 = scalar_select %p1950, %s19, 1
        %s1952 = smul.addr %s1951, 8
        %s1953 = scalar_lea.vmem %s7, %s1952
      $region60: #{upchannel_ban_forward.1} parent=55 // pred_fallthru
        _
    $region56: #{upchannel_ban_forward.1} parent=5 // pred_fallthru
      _
  $region6: #{upchannel_ban_forward.1} parent=0 // loop_footer
    %s17 = sadd.s32 1, %s13
  $region7: #{upchannel_ban_forward.1} parent=0 // loop_footer_branch
    %12 = sbr.rel target = $region3
  $region8: #{upchannel_ban_forward.1} parent=0 // loop_exit
    _

</llo_original>
